<compile_context>
chip_gen: v5e
topology: v5e:2x2
jax: 0.10.0
libtpu: 0.0.40
codegen_flags: <defaults>
</compile_context>

<pallas_src>
import functools

import jax
import jax.numpy as jnp
from jax import lax
from jax.experimental import pallas as pl
from jax.experimental.pallas import tpu as pltpu

K = 7          # kernel_size
P = 3          # padding for kernel_size == 7


def _round_up(x, m):
    return (x + m - 1) // m * m


def _spatial_attention_kernel(wtab_ref, x_ref, o_ref, pad_ref, *,
                              bt, ck, cgrid, hw, w, lpad, zero_cols):
    """Grid = (batch tiles [parallel], channel chunks [arbitrary, innermost]).

    wtab_ref: VMEM (2*K*K, lpad) f32 -- conv weights pre-multiplied by the
              per-kw column-halo mask (and by 1/C for the avg-plane rows).
    x_ref   : VMEM (bt, ck, hw)      -- input block, spatial dims flattened.
    o_ref   : VMEM (bt, 1, hw)       -- sigmoid(conv) output block.
    pad_ref : VMEM (2, bt, lpad) f32 -- running [sum, max] planes; lanes
              [0, hw) hold data, the guard lanes the rolls read are zero.
    """
    kidx = pl.program_id(1)

    # ---- running channel reduction (never materializes (bt, C, hw)) --------
    csub = min(ck, 8)
    csum = None
    cmax = None
    for c0 in range(0, ck, csub):
        cs = min(csub, ck - c0)
        blk = x_ref[:, pl.ds(c0, cs), :].astype(jnp.float32)     # (bt, cs, hw)
        s = jnp.sum(blk, axis=1)
        m = jnp.max(blk, axis=1)
        if csum is None:
            csum, cmax = s, m
        else:
            csum = csum + s
            cmax = jnp.maximum(cmax, m)

    @pl.when(kidx == 0)
    def _init():
        pad_ref[0, :, pl.ds(0, hw)] = csum
        pad_ref[1, :, pl.ds(0, hw)] = cmax
        # Zero only the guard lanes the rolled reads actually touch.
        for (start, size) in zero_cols:
            pad_ref[:, :, pl.ds(start, size)] = jnp.zeros(
                (2, bt, size), jnp.float32)

    @pl.when(kidx > 0)
    def _accumulate():
        pad_ref[0, :, pl.ds(0, hw)] = pad_ref[0, :, pl.ds(0, hw)] + csum
        pad_ref[1, :, pl.ds(0, hw)] = jnp.maximum(
            pad_ref[1, :, pl.ds(0, hw)], cmax)

    # ---- 7x7 conv + sigmoid on the last channel step ------------------------
    @pl.when(kidx == cgrid - 1)
    def _conv():
        def conv_group(row0, nrows):
            # Two aligned slab reads per group (sum plane, max plane).
            slabs = (pad_ref[0, pl.ds(row0, nrows), :],
                     pad_ref[1, pl.ds(row0, nrows), :])          # (nrows, lpad)
            acc = jnp.zeros((nrows, lpad), jnp.float32)          # vreg-resident
            for c in range(2):
                slab = slabs[c]
                for kh in range(K):
                    for kw in range(K):
                        # roll realizes the (kh-3, kw-3) shift in one go; the
                        # wrap / out-of-row reads land in zero guard lanes or
                        # are killed by the mask folded into the weight row.
                        shift = ((P - kh) * w + (P - kw)) % lpad
                        r = slab if shift == 0 else pltpu.roll(
                            slab, shift=shift, axis=1)
                        wrow = wtab_ref[pl.ds(c * K * K + kh * K + kw, 1), :]
                        acc = acc + wrow * r
            out = jax.nn.sigmoid(acc[:, :hw])
            o_ref[pl.ds(row0, nrows), 0, :] = out.astype(o_ref.dtype)

        n_full = bt // 8
        rem = bt - n_full * 8
        if n_full > 0:
            def body(g, carry):
                conv_group(pl.multiple_of(g * 8, 8), 8)
                return carry
            lax.fori_loop(0, n_full, body, 0)
        if rem > 0:
            conv_group(n_full * 8, rem)


def _vmem_capacity_bytes():
    try:
        info = pltpu.get_tpu_info()
        cap = getattr(info, "vmem_capacity_bytes", None)
        if cap:
            return int(cap)
    except Exception:
        pass
    return 128 << 20                      # v5e / v6e default


def _pick_channel_chunk(C, hw, itemsize, budget):
    if C * hw * itemsize <= budget:
        return C
    best = None
    for cand in range(8, C, 8):           # multiples of 8 that divide C
        if C % cand == 0 and cand * hw * itemsize <= budget:
            best = cand
    return best if best is not None else C   # no clean divisor: no chunking


def _pick_batch_tile(N, ck, hw, lpad, itemsize, budget):
    best = 1
    best_key = (False, 1)
    for cand in range(1, N + 1):
        if N % cand:
            continue
        if N >= 2 and N // cand < 2:      # keep >=2 grid steps (v7x megacore)
            continue
        if cand * ck * hw * itemsize > budget:
            continue
        if 2 * cand * lpad * 4 > budget:  # padded-plane scratch
            continue
        key = (cand % 8 == 0, cand)       # prefer sublane-aligned, then larger
        if key > best_key:
            best, best_key = cand, key
    return best


def spatial_attention(x, conv_weight):
    """x: (N, C, H, W); conv_weight: (1, 2, K, K) (OIHW, as in PyTorch)."""
    N, C, H, W = x.shape
    assert conv_weight.shape == (1, 2, K, K)
    HW = H * W
    GUARD = P * W + P                     # deepest halo reach in flat index
    LPAD = max(_round_up(HW + GUARD, 128), 128)

    # ---- weight table: conv weights * per-kw column mask, 1/C folded in ----
    col = jnp.arange(LPAD, dtype=jnp.int32) % W
    off = jnp.arange(K, dtype=jnp.int32)[:, None] - P              # (K, 1)
    shifted = col[None, :] + off                                    # (K, LPAD)
    mask = ((shifted >= 0) & (shifted < W)).astype(jnp.float32)
    wt = conv_weight[0].astype(jnp.float32)                         # (2, K, K)
    wt = wt * jnp.array([1.0 / C, 1.0], jnp.float32)[:, None, None]
    wtab = (wt[:, :, :, None] * mask[None, None, :, :]).reshape(2 * K * K, LPAD)

    # ---- generation-aware budgets (v7x has 64 MiB VMEM per TensorCore) -----
    vmem_cap = _vmem_capacity_bytes()
    small_vmem = vmem_cap <= (64 << 20)
    in_budget = (4 << 20) if small_vmem else (8 << 20)
    limit_cap = (32 << 20) if small_vmem else (48 << 20)

    itemsize = x.dtype.itemsize
    ck = _pick_channel_chunk(C, HW, itemsize, in_budget)
    bt = _pick_batch_tile(N, ck, HW, LPAD, itemsize, in_budget)
    cgrid = C // ck

    # ---- zero only the guard lanes the rolled reads can touch ---------------
    if LPAD - HW <= 2 * GUARD + 32:
        zero_cols = ((HW, LPAD - HW),)
    else:
        zero_cols = ((HW, GUARD), (LPAD - GUARD, GUARD))

    in_bytes = bt * ck * HW * itemsize
    out_bytes = bt * HW * itemsize
    wtab_bytes = 2 * K * K * LPAD * 4
    scratch_bytes = 2 * max(bt, 8) * LPAD * 4
    vmem_limit = 2 * (in_bytes + out_bytes + wtab_bytes) + scratch_bytes + (2 << 20)
    vmem_limit = int(min(max(vmem_limit, 16 << 20), limit_cap))

    kernel = functools.partial(
        _spatial_attention_kernel, bt=bt, ck=ck, cgrid=cgrid,
        hw=HW, w=W, lpad=LPAD, zero_cols=zero_cols)

    out_flat = pl.pallas_call(
        kernel,
        out_shape=jax.ShapeDtypeStruct((N, 1, HW), x.dtype),
        grid=(N // bt, cgrid),
        in_specs=[
            pl.BlockSpec((2 * K * K, LPAD), lambda b, k: (0, 0)),   # weight table
            pl.BlockSpec((bt, ck, HW), lambda b, k: (b, k, 0)),     # x (flattened)
        ],
        out_specs=pl.BlockSpec((bt, 1, HW), lambda b, k: (b, 0, 0)),
        scratch_shapes=[pltpu.VMEM((2, bt, LPAD), jnp.float32)],
        compiler_params=pltpu.CompilerParams(
            dimension_semantics=("parallel", "arbitrary"),
            vmem_limit_bytes=vmem_limit),
    )(wtab, x.reshape(N, C, HW))

    # Free reshape back to NCHW (lane-dense output presented by the kernel).
    return out_flat.reshape(N, 1, H, W)


def spatial_attention_ref(x, conv_weight):
    """Pure-JAX reference matching the PyTorch module exactly."""
    avg = jnp.mean(x, axis=1, keepdims=True)
    mx = jnp.max(x, axis=1, keepdims=True)
    xc = jnp.concatenate([avg, mx], axis=1)
    out = jax.lax.conv_general_dilated(
        xc, conv_weight, window_strides=(1, 1),
        padding=[(P, P), (P, P)],
        dimension_numbers=("NCHW", "OIHW", "NCHW"))
    return jax.nn.sigmoid(out)


if __name__ == "__main__":
    # Small deterministic inputs: batch=2, channels=4, spatial=16x16.
    key = jax.random.PRNGKey(0)
    x = jax.random.normal(key, (2, 4, 16, 16), dtype=jnp.float32)

    # Deterministic synthetic conv weight, shape (out=1, in=2, K, K) like
    # nn.Conv2d(2, 1, 7, padding=3, bias=False).
    wkey = jax.random.PRNGKey(1)
    conv_weight = 0.1 * jax.random.normal(wkey, (1, 2, K, K), dtype=jnp.float32)

    out = spatial_attention(x, conv_weight)
    jax.block_until_ready(out)

    ref = spatial_attention_ref(x, conv_weight)
    assert out.shape == (2, 1, 16, 16)
    assert jnp.allclose(out, ref, atol=1e-5, rtol=1e-5), \
        float(jnp.max(jnp.abs(out - ref)))

    print("KERNEL_OK")
</pallas_src>

<mosaic_0001>
module attributes {stable_mosaic.version = 11 : i64} {
  func.func @_spatial_attention_kernel(%arg0: i32, %arg1: i32, %arg2: memref<98x384xf32, #tpu.memory_space<vmem>>, %arg3: memref<1x4x256xf32, #tpu.memory_space<vmem>>, %arg4: memref<1x1x256xf32, #tpu.memory_space<vmem>>, %arg5: memref<2x1x384xf32, #tpu.memory_space<vmem>>) attributes {dimension_semantics = [#tpu.dimension_semantics<parallel>, #tpu.dimension_semantics<arbitrary>], iteration_bounds = array<i64: 2, 1>, scalar_prefetch = 0 : i64, scratch_operands = 1 : i64, tpu.core_type = #tpu.core_type<tc>, window_params = [{pipeline_mode = #tpu.pipeline_mode<synchronous>, transform_indices = @transform_0, window_bounds = array<i64: 98, 384>}, {transform_indices = @transform_1, window_bounds = array<i64: 1, 4, 256>}, {transform_indices = @transform_2, window_bounds = array<i64: 1, 1, 256>}]} {
    %c0 = arith.constant 0 : index
    %c0_0 = arith.constant 0 : index
    %c0_1 = arith.constant 0 : index
    %0 = vector.load %arg3[%c0, %c0_0, %c0_1] : memref<1x4x256xf32, #tpu.memory_space<vmem>>, vector<1x4x256xf32>
    %cst = arith.constant dense<0.000000e+00> : vector<1x256xf32>
    %1 = vector.multi_reduction <add>, %0, %cst [1] : vector<1x4x256xf32> to vector<1x256xf32>
    %cst_2 = arith.constant dense<0xFF800000> : vector<1x256xf32>
    %2 = vector.multi_reduction <maximumf>, %0, %cst_2 [1] : vector<1x4x256xf32> to vector<1x256xf32>
    %c0_i32 = arith.constant 0 : i32
    %3 = arith.cmpi eq, %arg1, %c0_i32 : i32
    %4 = arith.extui %3 : i1 to i32
    %c0_i32_3 = arith.constant 0 : i32
    %5 = arith.cmpi ne, %4, %c0_i32_3 : i32
    scf.if %5 {
      %c0_8 = arith.constant 0 : index
      %c0_9 = arith.constant 0 : index
      %c0_10 = arith.constant 0 : index
      %12 = vector.load %arg5[%c0_8, %c0_9, %c0_10] : memref<2x1x384xf32, #tpu.memory_space<vmem>>, vector<1x1x256xf32>
      %13 = vector.shape_cast %12 : vector<1x1x256xf32> to vector<1x256xf32>
      %14 = vector.shape_cast %1 : vector<1x256xf32> to vector<1x1x256xf32>
      tpu.vector_store %arg5[%c0_8, %c0_9, %c0_10], %14 {strides = array<i32>} : memref<2x1x384xf32, #tpu.memory_space<vmem>>, vector<1x1x256xf32>,
      %c1 = arith.constant 1 : index
      %c0_11 = arith.constant 0 : index
      %c0_12 = arith.constant 0 : index
      %15 = vector.load %arg5[%c1, %c0_11, %c0_12] : memref<2x1x384xf32, #tpu.memory_space<vmem>>, vector<1x1x256xf32>
      %16 = vector.shape_cast %15 : vector<1x1x256xf32> to vector<1x256xf32>
      %17 = vector.shape_cast %2 : vector<1x256xf32> to vector<1x1x256xf32>
      tpu.vector_store %arg5[%c1, %c0_11, %c0_12], %17 {strides = array<i32>} : memref<2x1x384xf32, #tpu.memory_space<vmem>>, vector<1x1x256xf32>,
      %cst_13 = arith.constant 0.000000e+00 : f32
      %18 = vector.broadcast %cst_13 : f32 to vector<2x1x128xf32>
      %c0_14 = arith.constant 0 : index
      %c0_15 = arith.constant 0 : index
      %c256 = arith.constant 256 : index
      %19 = vector.load %arg5[%c0_14, %c0_15, %c256] : memref<2x1x384xf32, #tpu.memory_space<vmem>>, vector<2x1x128xf32>
      tpu.vector_store %arg5[%c0_14, %c0_15, %c256], %18 {strides = array<i32>} : memref<2x1x384xf32, #tpu.memory_space<vmem>>, vector<2x1x128xf32>,
    } else {
    }
    %c0_i32_4 = arith.constant 0 : i32
    %6 = arith.cmpi sgt, %arg1, %c0_i32_4 : i32
    %7 = arith.extui %6 : i1 to i32
    %c0_i32_5 = arith.constant 0 : i32
    %8 = arith.cmpi ne, %7, %c0_i32_5 : i32
    scf.if %8 {
      %c0_8 = arith.constant 0 : index
      %c0_9 = arith.constant 0 : index
      %c0_10 = arith.constant 0 : index
      %12 = vector.load %arg5[%c0_8, %c0_9, %c0_10] : memref<2x1x384xf32, #tpu.memory_space<vmem>>, vector<1x1x256xf32>
      %13 = vector.shape_cast %12 : vector<1x1x256xf32> to vector<1x256xf32>
      %14 = arith.addf %13, %1 : vector<1x256xf32>
      %c0_11 = arith.constant 0 : index
      %c0_12 = arith.constant 0 : index
      %c0_13 = arith.constant 0 : index
      %15 = vector.load %arg5[%c0_11, %c0_12, %c0_13] : memref<2x1x384xf32, #tpu.memory_space<vmem>>, vector<1x1x256xf32>
      %16 = vector.shape_cast %15 : vector<1x1x256xf32> to vector<1x256xf32>
      %17 = vector.shape_cast %14 : vector<1x256xf32> to vector<1x1x256xf32>
      tpu.vector_store %arg5[%c0_11, %c0_12, %c0_13], %17 {strides = array<i32>} : memref<2x1x384xf32, #tpu.memory_space<vmem>>, vector<1x1x256xf32>,
      %c1 = arith.constant 1 : index
      %c0_14 = arith.constant 0 : index
      %c0_15 = arith.constant 0 : index
      %18 = vector.load %arg5[%c1, %c0_14, %c0_15] : memref<2x1x384xf32, #tpu.memory_space<vmem>>, vector<1x1x256xf32>
      %19 = vector.shape_cast %18 : vector<1x1x256xf32> to vector<1x256xf32>
      %20 = arith.maximumf %19, %2 : vector<1x256xf32>
      %c1_16 = arith.constant 1 : index
      %c0_17 = arith.constant 0 : index
      %c0_18 = arith.constant 0 : index
      %21 = vector.load %arg5[%c1_16, %c0_17, %c0_18] : memref<2x1x384xf32, #tpu.memory_space<vmem>>, vector<1x1x256xf32>
      %22 = vector.shape_cast %21 : vector<1x1x256xf32> to vector<1x256xf32>
      %23 = vector.shape_cast %20 : vector<1x256xf32> to vector<1x1x256xf32>
      tpu.vector_store %arg5[%c1_16, %c0_17, %c0_18], %23 {strides = array<i32>} : memref<2x1x384xf32, #tpu.memory_space<vmem>>, vector<1x1x256xf32>,
    } else {
    }
    %c0_i32_6 = arith.constant 0 : i32
    %9 = arith.cmpi eq, %arg1, %c0_i32_6 : i32
    %10 = arith.extui %9 : i1 to i32
    %c0_i32_7 = arith.constant 0 : i32
    %11 = arith.cmpi ne, %10, %c0_i32_7 : i32
    scf.if %11 {
      %c0_8 = arith.constant 0 : index
      %c0_9 = arith.constant 0 : index
      %c0_10 = arith.constant 0 : index
      %12 = vector.load %arg5[%c0_8, %c0_9, %c0_10] : memref<2x1x384xf32, #tpu.memory_space<vmem>>, vector<1x1x384xf32>
      %13 = vector.shape_cast %12 : vector<1x1x384xf32> to vector<1x384xf32>
      %c1 = arith.constant 1 : index
      %c0_11 = arith.constant 0 : index
      %c0_12 = arith.constant 0 : index
      %14 = vector.load %arg5[%c1, %c0_11, %c0_12] : memref<2x1x384xf32, #tpu.memory_space<vmem>>, vector<1x1x384xf32>
      %15 = vector.shape_cast %14 : vector<1x1x384xf32> to vector<1x384xf32>
      %cst_13 = arith.constant 0.000000e+00 : f32
      %16 = vector.broadcast %cst_13 : f32 to vector<1x384xf32>
      %c51_i32 = arith.constant 51 : i32
      %17 = tpu.dynamic_rotate %13 by %c51_i32 dim 1 : vector<1x384xf32>, i32 -> vector<1x384xf32>
      %c0_14 = arith.constant 0 : index
      %c0_15 = arith.constant 0 : index
      %18 = vector.load %arg2[%c0_14, %c0_15] : memref<98x384xf32, #tpu.memory_space<vmem>>, vector<1x384xf32>
      %19 = arith.mulf %18, %17 : vector<1x384xf32>
      %20 = arith.addf %16, %19 : vector<1x384xf32>
      %c50_i32 = arith.constant 50 : i32
      %21 = tpu.dynamic_rotate %13 by %c50_i32 dim 1 : vector<1x384xf32>, i32 -> vector<1x384xf32>
      %c1_16 = arith.constant 1 : index
      %c0_17 = arith.constant 0 : index
      %22 = vector.load %arg2[%c1_16, %c0_17] : memref<98x384xf32, #tpu.memory_space<vmem>>, vector<1x384xf32>
      %23 = arith.mulf %22, %21 : vector<1x384xf32>
      %24 = arith.addf %20, %23 : vector<1x384xf32>
      %c49_i32 = arith.constant 49 : i32
      %25 = tpu.dynamic_rotate %13 by %c49_i32 dim 1 : vector<1x384xf32>, i32 -> vector<1x384xf32>
      %c2 = arith.constant 2 : index
      %c0_18 = arith.constant 0 : index
      %26 = vector.load %arg2[%c2, %c0_18] : memref<98x384xf32, #tpu.memory_space<vmem>>, vector<1x384xf32>
      %27 = arith.mulf %26, %25 : vector<1x384xf32>
      %28 = arith.addf %24, %27 : vector<1x384xf32>
      %c48_i32 = arith.constant 48 : i32
      %29 = tpu.dynamic_rotate %13 by %c48_i32 dim 1 : vector<1x384xf32>, i32 -> vector<1x384xf32>
      %c3 = arith.constant 3 : index
      %c0_19 = arith.constant 0 : index
      %30 = vector.load %arg2[%c3, %c0_19] : memref<98x384xf32, #tpu.memory_space<vmem>>, vector<1x384xf32>
      %31 = arith.mulf %30, %29 : vector<1x384xf32>
      %32 = arith.addf %28, %31 : vector<1x384xf32>
      %c47_i32 = arith.constant 47 : i32
      %33 = tpu.dynamic_rotate %13 by %c47_i32 dim 1 : vector<1x384xf32>, i32 -> vector<1x384xf32>
      %c4 = arith.constant 4 : index
      %c0_20 = arith.constant 0 : index
      %34 = vector.load %arg2[%c4, %c0_20] : memref<98x384xf32, #tpu.memory_space<vmem>>, vector<1x384xf32>
      %35 = arith.mulf %34, %33 : vector<1x384xf32>
      %36 = arith.addf %32, %35 : vector<1x384xf32>
      %c46_i32 = arith.constant 46 : i32
      %37 = tpu.dynamic_rotate %13 by %c46_i32 dim 1 : vector<1x384xf32>, i32 -> vector<1x384xf32>
      %c5 = arith.constant 5 : index
      %c0_21 = arith.constant 0 : index
      %38 = vector.load %arg2[%c5, %c0_21] : memref<98x384xf32, #tpu.memory_space<vmem>>, vector<1x384xf32>
      %39 = arith.mulf %38, %37 : vector<1x384xf32>
      %40 = arith.addf %36, %39 : vector<1x384xf32>
      %c45_i32 = arith.constant 45 : i32
      %41 = tpu.dynamic_rotate %13 by %c45_i32 dim 1 : vector<1x384xf32>, i32 -> vector<1x384xf32>
      %c6 = arith.constant 6 : index
      %c0_22 = arith.constant 0 : index
      %42 = vector.load %arg2[%c6, %c0_22] : memref<98x384xf32, #tpu.memory_space<vmem>>, vector<1x384xf32>
      %43 = arith.mulf %42, %41 : vector<1x384xf32>
      %44 = arith.addf %40, %43 : vector<1x384xf32>
      %c35_i32 = arith.constant 35 : i32
      %45 = tpu.dynamic_rotate %13 by %c35_i32 dim 1 : vector<1x384xf32>, i32 -> vector<1x384xf32>
      %c7 = arith.constant 7 : index
      %c0_23 = arith.constant 0 : index
      %46 = vector.load %arg2[%c7, %c0_23] : memref<98x384xf32, #tpu.memory_space<vmem>>, vector<1x384xf32>
      %47 = arith.mulf %46, %45 : vector<1x384xf32>
      %48 = arith.addf %44, %47 : vector<1x384xf32>
      %c34_i32 = arith.constant 34 : i32
      %49 = tpu.dynamic_rotate %13 by %c34_i32 dim 1 : vector<1x384xf32>, i32 -> vector<1x384xf32>
      %c8 = arith.constant 8 : index
      %c0_24 = arith.constant 0 : index
      %50 = vector.load %arg2[%c8, %c0_24] : memref<98x384xf32, #tpu.memory_space<vmem>>, vector<1x384xf32>
      %51 = arith.mulf %50, %49 : vector<1x384xf32>
      %52 = arith.addf %48, %51 : vector<1x384xf32>
      %c33_i32 = arith.constant 33 : i32
      %53 = tpu.dynamic_rotate %13 by %c33_i32 dim 1 : vector<1x384xf32>, i32 -> vector<1x384xf32>
      %c9 = arith.constant 9 : index
      %c0_25 = arith.constant 0 : index
      %54 = vector.load %arg2[%c9, %c0_25] : memref<98x384xf32, #tpu.memory_space<vmem>>, vector<1x384xf32>
      %55 = arith.mulf %54, %53 : vector<1x384xf32>
      %56 = arith.addf %52, %55 : vector<1x384xf32>
      %c32_i32 = arith.constant 32 : i32
      %57 = tpu.dynamic_rotate %13 by %c32_i32 dim 1 : vector<1x384xf32>, i32 -> vector<1x384xf32>
      %c10 = arith.constant 10 : index
      %c0_26 = arith.constant 0 : index
      %58 = vector.load %arg2[%c10, %c0_26] : memref<98x384xf32, #tpu.memory_space<vmem>>, vector<1x384xf32>
      %59 = arith.mulf %58, %57 : vector<1x384xf32>
      %60 = arith.addf %56, %59 : vector<1x384xf32>
      %c31_i32 = arith.constant 31 : i32
      %61 = tpu.dynamic_rotate %13 by %c31_i32 dim 1 : vector<1x384xf32>, i32 -> vector<1x384xf32>
      %c11 = arith.constant 11 : index
      %c0_27 = arith.constant 0 : index
      %62 = vector.load %arg2[%c11, %c0_27] : memref<98x384xf32, #tpu.memory_space<vmem>>, vector<1x384xf32>
      %63 = arith.mulf %62, %61 : vector<1x384xf32>
      %64 = arith.addf %60, %63 : vector<1x384xf32>
      %c30_i32 = arith.constant 30 : i32
      %65 = tpu.dynamic_rotate %13 by %c30_i32 dim 1 : vector<1x384xf32>, i32 -> vector<1x384xf32>
      %c12 = arith.constant 12 : index
      %c0_28 = arith.constant 0 : index
      %66 = vector.load %arg2[%c12, %c0_28] : memref<98x384xf32, #tpu.memory_space<vmem>>, vector<1x384xf32>
      %67 = arith.mulf %66, %65 : vector<1x384xf32>
      %68 = arith.addf %64, %67 : vector<1x384xf32>
      %c29_i32 = arith.constant 29 : i32
      %69 = tpu.dynamic_rotate %13 by %c29_i32 dim 1 : vector<1x384xf32>, i32 -> vector<1x384xf32>
      %c13 = arith.constant 13 : index
      %c0_29 = arith.constant 0 : index
      %70 = vector.load %arg2[%c13, %c0_29] : memref<98x384xf32, #tpu.memory_space<vmem>>, vector<1x384xf32>
      %71 = arith.mulf %70, %69 : vector<1x384xf32>
      %72 = arith.addf %68, %71 : vector<1x384xf32>
      %c19_i32 = arith.constant 19 : i32
      %73 = tpu.dynamic_rotate %13 by %c19_i32 dim 1 : vector<1x384xf32>, i32 -> vector<1x384xf32>
      %c14 = arith.constant 14 : index
      %c0_30 = arith.constant 0 : index
      %74 = vector.load %arg2[%c14, %c0_30] : memref<98x384xf32, #tpu.memory_space<vmem>>, vector<1x384xf32>
      %75 = arith.mulf %74, %73 : vector<1x384xf32>
      %76 = arith.addf %72, %75 : vector<1x384xf32>
      %c18_i32 = arith.constant 18 : i32
      %77 = tpu.dynamic_rotate %13 by %c18_i32 dim 1 : vector<1x384xf32>, i32 -> vector<1x384xf32>
      %c15 = arith.constant 15 : index
      %c0_31 = arith.constant 0 : index
      %78 = vector.load %arg2[%c15, %c0_31] : memref<98x384xf32, #tpu.memory_space<vmem>>, vector<1x384xf32>
      %79 = arith.mulf %78, %77 : vector<1x384xf32>
      %80 = arith.addf %76, %79 : vector<1x384xf32>
      %c17_i32 = arith.constant 17 : i32
      %81 = tpu.dynamic_rotate %13 by %c17_i32 dim 1 : vector<1x384xf32>, i32 -> vector<1x384xf32>
      %c16 = arith.constant 16 : index
      %c0_32 = arith.constant 0 : index
      %82 = vector.load %arg2[%c16, %c0_32] : memref<98x384xf32, #tpu.memory_space<vmem>>, vector<1x384xf32>
      %83 = arith.mulf %82, %81 : vector<1x384xf32>
      %84 = arith.addf %80, %83 : vector<1x384xf32>
      %c16_i32 = arith.constant 16 : i32
      %85 = tpu.dynamic_rotate %13 by %c16_i32 dim 1 : vector<1x384xf32>, i32 -> vector<1x384xf32>
      %c17 = arith.constant 17 : index
      %c0_33 = arith.constant 0 : index
      %86 = vector.load %arg2[%c17, %c0_33] : memref<98x384xf32, #tpu.memory_space<vmem>>, vector<1x384xf32>
      %87 = arith.mulf %86, %85 : vector<1x384xf32>
      %88 = arith.addf %84, %87 : vector<1x384xf32>
      %c15_i32 = arith.constant 15 : i32
      %89 = tpu.dynamic_rotate %13 by %c15_i32 dim 1 : vector<1x384xf32>, i32 -> vector<1x384xf32>
      %c18 = arith.constant 18 : index
      %c0_34 = arith.constant 0 : index
      %90 = vector.load %arg2[%c18, %c0_34] : memref<98x384xf32, #tpu.memory_space<vmem>>, vector<1x384xf32>
      %91 = arith.mulf %90, %89 : vector<1x384xf32>
      %92 = arith.addf %88, %91 : vector<1x384xf32>
      %c14_i32 = arith.constant 14 : i32
      %93 = tpu.dynamic_rotate %13 by %c14_i32 dim 1 : vector<1x384xf32>, i32 -> vector<1x384xf32>
      %c19 = arith.constant 19 : index
      %c0_35 = arith.constant 0 : index
      %94 = vector.load %arg2[%c19, %c0_35] : memref<98x384xf32, #tpu.memory_space<vmem>>, vector<1x384xf32>
      %95 = arith.mulf %94, %93 : vector<1x384xf32>
      %96 = arith.addf %92, %95 : vector<1x384xf32>
      %c13_i32 = arith.constant 13 : i32
      %97 = tpu.dynamic_rotate %13 by %c13_i32 dim 1 : vector<1x384xf32>, i32 -> vector<1x384xf32>
      %c20 = arith.constant 20 : index
      %c0_36 = arith.constant 0 : index
      %98 = vector.load %arg2[%c20, %c0_36] : memref<98x384xf32, #tpu.memory_space<vmem>>, vector<1x384xf32>
      %99 = arith.mulf %98, %97 : vector<1x384xf32>
      %100 = arith.addf %96, %99 : vector<1x384xf32>
      %c3_i32 = arith.constant 3 : i32
      %101 = tpu.dynamic_rotate %13 by %c3_i32 dim 1 : vector<1x384xf32>, i32 -> vector<1x384xf32>
      %c21 = arith.constant 21 : index
      %c0_37 = arith.constant 0 : index
      %102 = vector.load %arg2[%c21, %c0_37] : memref<98x384xf32, #tpu.memory_space<vmem>>, vector<1x384xf32>
      %103 = arith.mulf %102, %101 : vector<1x384xf32>
      %104 = arith.addf %100, %103 : vector<1x384xf32>
      %c2_i32 = arith.constant 2 : i32
      %105 = tpu.dynamic_rotate %13 by %c2_i32 dim 1 : vector<1x384xf32>, i32 -> vector<1x384xf32>
      %c22 = arith.constant 22 : index
      %c0_38 = arith.constant 0 : index
      %106 = vector.load %arg2[%c22, %c0_38] : memref<98x384xf32, #tpu.memory_space<vmem>>, vector<1x384xf32>
      %107 = arith.mulf %106, %105 : vector<1x384xf32>
      %108 = arith.addf %104, %107 : vector<1x384xf32>
      %c1_i32 = arith.constant 1 : i32
      %109 = tpu.dynamic_rotate %13 by %c1_i32 dim 1 : vector<1x384xf32>, i32 -> vector<1x384xf32>
      %c23 = arith.constant 23 : index
      %c0_39 = arith.constant 0 : index
      %110 = vector.load %arg2[%c23, %c0_39] : memref<98x384xf32, #tpu.memory_space<vmem>>, vector<1x384xf32>
      %111 = arith.mulf %110, %109 : vector<1x384xf32>
      %112 = arith.addf %108, %111 : vector<1x384xf32>
      %c24 = arith.constant 24 : index
      %c0_40 = arith.constant 0 : index
      %113 = vector.load %arg2[%c24, %c0_40] : memref<98x384xf32, #tpu.memory_space<vmem>>, vector<1x384xf32>
      %114 = arith.mulf %113, %13 : vector<1x384xf32>
      %115 = arith.addf %112, %114 : vector<1x384xf32>
      %c383_i32 = arith.constant 383 : i32
      %116 = tpu.dynamic_rotate %13 by %c383_i32 dim 1 : vector<1x384xf32>, i32 -> vector<1x384xf32>
      %c25 = arith.constant 25 : index
      %c0_41 = arith.constant 0 : index
      %117 = vector.load %arg2[%c25, %c0_41] : memref<98x384xf32, #tpu.memory_space<vmem>>, vector<1x384xf32>
      %118 = arith.mulf %117, %116 : vector<1x384xf32>
      %119 = arith.addf %115, %118 : vector<1x384xf32>
      %c382_i32 = arith.constant 382 : i32
      %120 = tpu.dynamic_rotate %13 by %c382_i32 dim 1 : vector<1x384xf32>, i32 -> vector<1x384xf32>
      %c26 = arith.constant 26 : index
      %c0_42 = arith.constant 0 : index
      %121 = vector.load %arg2[%c26, %c0_42] : memref<98x384xf32, #tpu.memory_space<vmem>>, vector<1x384xf32>
      %122 = arith.mulf %121, %120 : vector<1x384xf32>
      %123 = arith.addf %119, %122 : vector<1x384xf32>
      %c381_i32 = arith.constant 381 : i32
      %124 = tpu.dynamic_rotate %13 by %c381_i32 dim 1 : vector<1x384xf32>, i32 -> vector<1x384xf32>
      %c27 = arith.constant 27 : index
      %c0_43 = arith.constant 0 : index
      %125 = vector.load %arg2[%c27, %c0_43] : memref<98x384xf32, #tpu.memory_space<vmem>>, vector<1x384xf32>
      %126 = arith.mulf %125, %124 : vector<1x384xf32>
      %127 = arith.addf %123, %126 : vector<1x384xf32>
      %c371_i32 = arith.constant 371 : i32
      %128 = tpu.dynamic_rotate %13 by %c371_i32 dim 1 : vector<1x384xf32>, i32 -> vector<1x384xf32>
      %c28 = arith.constant 28 : index
      %c0_44 = arith.constant 0 : index
      %129 = vector.load %arg2[%c28, %c0_44] : memref<98x384xf32, #tpu.memory_space<vmem>>, vector<1x384xf32>
      %130 = arith.mulf %129, %128 : vector<1x384xf32>
      %131 = arith.addf %127, %130 : vector<1x384xf32>
      %c370_i32 = arith.constant 370 : i32
      %132 = tpu.dynamic_rotate %13 by %c370_i32 dim 1 : vector<1x384xf32>, i32 -> vector<1x384xf32>
      %c29 = arith.constant 29 : index
      %c0_45 = arith.constant 0 : index
      %133 = vector.load %arg2[%c29, %c0_45] : memref<98x384xf32, #tpu.memory_space<vmem>>, vector<1x384xf32>
      %134 = arith.mulf %133, %132 : vector<1x384xf32>
      %135 = arith.addf %131, %134 : vector<1x384xf32>
      %c369_i32 = arith.constant 369 : i32
      %136 = tpu.dynamic_rotate %13 by %c369_i32 dim 1 : vector<1x384xf32>, i32 -> vector<1x384xf32>
      %c30 = arith.constant 30 : index
      %c0_46 = arith.constant 0 : index
      %137 = vector.load %arg2[%c30, %c0_46] : memref<98x384xf32, #tpu.memory_space<vmem>>, vector<1x384xf32>
      %138 = arith.mulf %137, %136 : vector<1x384xf32>
      %139 = arith.addf %135, %138 : vector<1x384xf32>
      %c368_i32 = arith.constant 368 : i32
      %140 = tpu.dynamic_rotate %13 by %c368_i32 dim 1 : vector<1x384xf32>, i32 -> vector<1x384xf32>
      %c31 = arith.constant 31 : index
      %c0_47 = arith.constant 0 : index
      %141 = vector.load %arg2[%c31, %c0_47] : memref<98x384xf32, #tpu.memory_space<vmem>>, vector<1x384xf32>
      %142 = arith.mulf %141, %140 : vector<1x384xf32>
      %143 = arith.addf %139, %142 : vector<1x384xf32>
      %c367_i32 = arith.constant 367 : i32
      %144 = tpu.dynamic_rotate %13 by %c367_i32 dim 1 : vector<1x384xf32>, i32 -> vector<1x384xf32>
      %c32 = arith.constant 32 : index
      %c0_48 = arith.constant 0 : index
      %145 = vector.load %arg2[%c32, %c0_48] : memref<98x384xf32, #tpu.memory_space<vmem>>, vector<1x384xf32>
      %146 = arith.mulf %145, %144 : vector<1x384xf32>
      %147 = arith.addf %143, %146 : vector<1x384xf32>
      %c366_i32 = arith.constant 366 : i32
      %148 = tpu.dynamic_rotate %13 by %c366_i32 dim 1 : vector<1x384xf32>, i32 -> vector<1x384xf32>
      %c33 = arith.constant 33 : index
      %c0_49 = arith.constant 0 : index
      %149 = vector.load %arg2[%c33, %c0_49] : memref<98x384xf32, #tpu.memory_space<vmem>>, vector<1x384xf32>
      %150 = arith.mulf %149, %148 : vector<1x384xf32>
      %151 = arith.addf %147, %150 : vector<1x384xf32>
      %c365_i32 = arith.constant 365 : i32
      %152 = tpu.dynamic_rotate %13 by %c365_i32 dim 1 : vector<1x384xf32>, i32 -> vector<1x384xf32>
      %c34 = arith.constant 34 : index
      %c0_50 = arith.constant 0 : index
      %153 = vector.load %arg2[%c34, %c0_50] : memref<98x384xf32, #tpu.memory_space<vmem>>, vector<1x384xf32>
      %154 = arith.mulf %153, %152 : vector<1x384xf32>
      %155 = arith.addf %151, %154 : vector<1x384xf32>
      %c355_i32 = arith.constant 355 : i32
      %156 = tpu.dynamic_rotate %13 by %c355_i32 dim 1 : vector<1x384xf32>, i32 -> vector<1x384xf32>
      %c35 = arith.constant 35 : index
      %c0_51 = arith.constant 0 : index
      %157 = vector.load %arg2[%c35, %c0_51] : memref<98x384xf32, #tpu.memory_space<vmem>>, vector<1x384xf32>
      %158 = arith.mulf %157, %156 : vector<1x384xf32>
      %159 = arith.addf %155, %158 : vector<1x384xf32>
      %c354_i32 = arith.constant 354 : i32
      %160 = tpu.dynamic_rotate %13 by %c354_i32 dim 1 : vector<1x384xf32>, i32 -> vector<1x384xf32>
      %c36 = arith.constant 36 : index
      %c0_52 = arith.constant 0 : index
      %161 = vector.load %arg2[%c36, %c0_52] : memref<98x384xf32, #tpu.memory_space<vmem>>, vector<1x384xf32>
      %162 = arith.mulf %161, %160 : vector<1x384xf32>
      %163 = arith.addf %159, %162 : vector<1x384xf32>
      %c353_i32 = arith.constant 353 : i32
      %164 = tpu.dynamic_rotate %13 by %c353_i32 dim 1 : vector<1x384xf32>, i32 -> vector<1x384xf32>
      %c37 = arith.constant 37 : index
      %c0_53 = arith.constant 0 : index
      %165 = vector.load %arg2[%c37, %c0_53] : memref<98x384xf32, #tpu.memory_space<vmem>>, vector<1x384xf32>
      %166 = arith.mulf %165, %164 : vector<1x384xf32>
      %167 = arith.addf %163, %166 : vector<1x384xf32>
      %c352_i32 = arith.constant 352 : i32
      %168 = tpu.dynamic_rotate %13 by %c352_i32 dim 1 : vector<1x384xf32>, i32 -> vector<1x384xf32>
      %c38 = arith.constant 38 : index
      %c0_54 = arith.constant 0 : index
      %169 = vector.load %arg2[%c38, %c0_54] : memref<98x384xf32, #tpu.memory_space<vmem>>, vector<1x384xf32>
      %170 = arith.mulf %169, %168 : vector<1x384xf32>
      %171 = arith.addf %167, %170 : vector<1x384xf32>
      %c351_i32 = arith.constant 351 : i32
      %172 = tpu.dynamic_rotate %13 by %c351_i32 dim 1 : vector<1x384xf32>, i32 -> vector<1x384xf32>
      %c39 = arith.constant 39 : index
      %c0_55 = arith.constant 0 : index
      %173 = vector.load %arg2[%c39, %c0_55] : memref<98x384xf32, #tpu.memory_space<vmem>>, vector<1x384xf32>
      %174 = arith.mulf %173, %172 : vector<1x384xf32>
      %175 = arith.addf %171, %174 : vector<1x384xf32>
      %c350_i32 = arith.constant 350 : i32
      %176 = tpu.dynamic_rotate %13 by %c350_i32 dim 1 : vector<1x384xf32>, i32 -> vector<1x384xf32>
      %c40 = arith.constant 40 : index
      %c0_56 = arith.constant 0 : index
      %177 = vector.load %arg2[%c40, %c0_56] : memref<98x384xf32, #tpu.memory_space<vmem>>, vector<1x384xf32>
      %178 = arith.mulf %177, %176 : vector<1x384xf32>
      %179 = arith.addf %175, %178 : vector<1x384xf32>
      %c349_i32 = arith.constant 349 : i32
      %180 = tpu.dynamic_rotate %13 by %c349_i32 dim 1 : vector<1x384xf32>, i32 -> vector<1x384xf32>
      %c41 = arith.constant 41 : index
      %c0_57 = arith.constant 0 : index
      %181 = vector.load %arg2[%c41, %c0_57] : memref<98x384xf32, #tpu.memory_space<vmem>>, vector<1x384xf32>
      %182 = arith.mulf %181, %180 : vector<1x384xf32>
      %183 = arith.addf %179, %182 : vector<1x384xf32>
      %c339_i32 = arith.constant 339 : i32
      %184 = tpu.dynamic_rotate %13 by %c339_i32 dim 1 : vector<1x384xf32>, i32 -> vector<1x384xf32>
      %c42 = arith.constant 42 : index
      %c0_58 = arith.constant 0 : index
      %185 = vector.load %arg2[%c42, %c0_58] : memref<98x384xf32, #tpu.memory_space<vmem>>, vector<1x384xf32>
      %186 = arith.mulf %185, %184 : vector<1x384xf32>
      %187 = arith.addf %183, %186 : vector<1x384xf32>
      %c338_i32 = arith.constant 338 : i32
      %188 = tpu.dynamic_rotate %13 by %c338_i32 dim 1 : vector<1x384xf32>, i32 -> vector<1x384xf32>
      %c43 = arith.constant 43 : index
      %c0_59 = arith.constant 0 : index
      %189 = vector.load %arg2[%c43, %c0_59] : memref<98x384xf32, #tpu.memory_space<vmem>>, vector<1x384xf32>
      %190 = arith.mulf %189, %188 : vector<1x384xf32>
      %191 = arith.addf %187, %190 : vector<1x384xf32>
      %c337_i32 = arith.constant 337 : i32
      %192 = tpu.dynamic_rotate %13 by %c337_i32 dim 1 : vector<1x384xf32>, i32 -> vector<1x384xf32>
      %c44 = arith.constant 44 : index
      %c0_60 = arith.constant 0 : index
      %193 = vector.load %arg2[%c44, %c0_60] : memref<98x384xf32, #tpu.memory_space<vmem>>, vector<1x384xf32>
      %194 = arith.mulf %193, %192 : vector<1x384xf32>
      %195 = arith.addf %191, %194 : vector<1x384xf32>
      %c336_i32 = arith.constant 336 : i32
      %196 = tpu.dynamic_rotate %13 by %c336_i32 dim 1 : vector<1x384xf32>, i32 -> vector<1x384xf32>
      %c45 = arith.constant 45 : index
      %c0_61 = arith.constant 0 : index
      %197 = vector.load %arg2[%c45, %c0_61] : memref<98x384xf32, #tpu.memory_space<vmem>>, vector<1x384xf32>
      %198 = arith.mulf %197, %196 : vector<1x384xf32>
      %199 = arith.addf %195, %198 : vector<1x384xf32>
      %c335_i32 = arith.constant 335 : i32
      %200 = tpu.dynamic_rotate %13 by %c335_i32 dim 1 : vector<1x384xf32>, i32 -> vector<1x384xf32>
      %c46 = arith.constant 46 : index
      %c0_62 = arith.constant 0 : index
      %201 = vector.load %arg2[%c46, %c0_62] : memref<98x384xf32, #tpu.memory_space<vmem>>, vector<1x384xf32>
      %202 = arith.mulf %201, %200 : vector<1x384xf32>
      %203 = arith.addf %199, %202 : vector<1x384xf32>
      %c334_i32 = arith.constant 334 : i32
      %204 = tpu.dynamic_rotate %13 by %c334_i32 dim 1 : vector<1x384xf32>, i32 -> vector<1x384xf32>
      %c47 = arith.constant 47 : index
      %c0_63 = arith.constant 0 : index
      %205 = vector.load %arg2[%c47, %c0_63] : memref<98x384xf32, #tpu.memory_space<vmem>>, vector<1x384xf32>
      %206 = arith.mulf %205, %204 : vector<1x384xf32>
      %207 = arith.addf %203, %206 : vector<1x384xf32>
      %c333_i32 = arith.constant 333 : i32
      %208 = tpu.dynamic_rotate %13 by %c333_i32 dim 1 : vector<1x384xf32>, i32 -> vector<1x384xf32>
      %c48 = arith.constant 48 : index
      %c0_64 = arith.constant 0 : index
      %209 = vector.load %arg2[%c48, %c0_64] : memref<98x384xf32, #tpu.memory_space<vmem>>, vector<1x384xf32>
      %210 = arith.mulf %209, %208 : vector<1x384xf32>
      %211 = arith.addf %207, %210 : vector<1x384xf32>
      %c51_i32_65 = arith.constant 51 : i32
      %212 = tpu.dynamic_rotate %15 by %c51_i32_65 dim 1 : vector<1x384xf32>, i32 -> vector<1x384xf32>
      %c49 = arith.constant 49 : index
      %c0_66 = arith.constant 0 : index
      %213 = vector.load %arg2[%c49, %c0_66] : memref<98x384xf32, #tpu.memory_space<vmem>>, vector<1x384xf32>
      %214 = arith.mulf %213, %212 : vector<1x384xf32>
      %215 = arith.addf %211, %214 : vector<1x384xf32>
      %c50_i32_67 = arith.constant 50 : i32
      %216 = tpu.dynamic_rotate %15 by %c50_i32_67 dim 1 : vector<1x384xf32>, i32 -> vector<1x384xf32>
      %c50 = arith.constant 50 : index
      %c0_68 = arith.constant 0 : index
      %217 = vector.load %arg2[%c50, %c0_68] : memref<98x384xf32, #tpu.memory_space<vmem>>, vector<1x384xf32>
      %218 = arith.mulf %217, %216 : vector<1x384xf32>
      %219 = arith.addf %215, %218 : vector<1x384xf32>
      %c49_i32_69 = arith.constant 49 : i32
      %220 = tpu.dynamic_rotate %15 by %c49_i32_69 dim 1 : vector<1x384xf32>, i32 -> vector<1x384xf32>
      %c51 = arith.constant 51 : index
      %c0_70 = arith.constant 0 : index
      %221 = vector.load %arg2[%c51, %c0_70] : memref<98x384xf32, #tpu.memory_space<vmem>>, vector<1x384xf32>
      %222 = arith.mulf %221, %220 : vector<1x384xf32>
      %223 = arith.addf %219, %222 : vector<1x384xf32>
      %c48_i32_71 = arith.constant 48 : i32
      %224 = tpu.dynamic_rotate %15 by %c48_i32_71 dim 1 : vector<1x384xf32>, i32 -> vector<1x384xf32>
      %c52 = arith.constant 52 : index
      %c0_72 = arith.constant 0 : index
      %225 = vector.load %arg2[%c52, %c0_72] : memref<98x384xf32, #tpu.memory_space<vmem>>, vector<1x384xf32>
      %226 = arith.mulf %225, %224 : vector<1x384xf32>
      %227 = arith.addf %223, %226 : vector<1x384xf32>
      %c47_i32_73 = arith.constant 47 : i32
      %228 = tpu.dynamic_rotate %15 by %c47_i32_73 dim 1 : vector<1x384xf32>, i32 -> vector<1x384xf32>
      %c53 = arith.constant 53 : index
      %c0_74 = arith.constant 0 : index
      %229 = vector.load %arg2[%c53, %c0_74] : memref<98x384xf32, #tpu.memory_space<vmem>>, vector<1x384xf32>
      %230 = arith.mulf %229, %228 : vector<1x384xf32>
      %231 = arith.addf %227, %230 : vector<1x384xf32>
      %c46_i32_75 = arith.constant 46 : i32
      %232 = tpu.dynamic_rotate %15 by %c46_i32_75 dim 1 : vector<1x384xf32>, i32 -> vector<1x384xf32>
      %c54 = arith.constant 54 : index
      %c0_76 = arith.constant 0 : index
      %233 = vector.load %arg2[%c54, %c0_76] : memref<98x384xf32, #tpu.memory_space<vmem>>, vector<1x384xf32>
      %234 = arith.mulf %233, %232 : vector<1x384xf32>
      %235 = arith.addf %231, %234 : vector<1x384xf32>
      %c45_i32_77 = arith.constant 45 : i32
      %236 = tpu.dynamic_rotate %15 by %c45_i32_77 dim 1 : vector<1x384xf32>, i32 -> vector<1x384xf32>
      %c55 = arith.constant 55 : index
      %c0_78 = arith.constant 0 : index
      %237 = vector.load %arg2[%c55, %c0_78] : memref<98x384xf32, #tpu.memory_space<vmem>>, vector<1x384xf32>
      %238 = arith.mulf %237, %236 : vector<1x384xf32>
      %239 = arith.addf %235, %238 : vector<1x384xf32>
      %c35_i32_79 = arith.constant 35 : i32
      %240 = tpu.dynamic_rotate %15 by %c35_i32_79 dim 1 : vector<1x384xf32>, i32 -> vector<1x384xf32>
      %c56 = arith.constant 56 : index
      %c0_80 = arith.constant 0 : index
      %241 = vector.load %arg2[%c56, %c0_80] : memref<98x384xf32, #tpu.memory_space<vmem>>, vector<1x384xf32>
      %242 = arith.mulf %241, %240 : vector<1x384xf32>
      %243 = arith.addf %239, %242 : vector<1x384xf32>
      %c34_i32_81 = arith.constant 34 : i32
      %244 = tpu.dynamic_rotate %15 by %c34_i32_81 dim 1 : vector<1x384xf32>, i32 -> vector<1x384xf32>
      %c57 = arith.constant 57 : index
      %c0_82 = arith.constant 0 : index
      %245 = vector.load %arg2[%c57, %c0_82] : memref<98x384xf32, #tpu.memory_space<vmem>>, vector<1x384xf32>
      %246 = arith.mulf %245, %244 : vector<1x384xf32>
      %247 = arith.addf %243, %246 : vector<1x384xf32>
      %c33_i32_83 = arith.constant 33 : i32
      %248 = tpu.dynamic_rotate %15 by %c33_i32_83 dim 1 : vector<1x384xf32>, i32 -> vector<1x384xf32>
      %c58 = arith.constant 58 : index
      %c0_84 = arith.constant 0 : index
      %249 = vector.load %arg2[%c58, %c0_84] : memref<98x384xf32, #tpu.memory_space<vmem>>, vector<1x384xf32>
      %250 = arith.mulf %249, %248 : vector<1x384xf32>
      %251 = arith.addf %247, %250 : vector<1x384xf32>
      %c32_i32_85 = arith.constant 32 : i32
      %252 = tpu.dynamic_rotate %15 by %c32_i32_85 dim 1 : vector<1x384xf32>, i32 -> vector<1x384xf32>
      %c59 = arith.constant 59 : index
      %c0_86 = arith.constant 0 : index
      %253 = vector.load %arg2[%c59, %c0_86] : memref<98x384xf32, #tpu.memory_space<vmem>>, vector<1x384xf32>
      %254 = arith.mulf %253, %252 : vector<1x384xf32>
      %255 = arith.addf %251, %254 : vector<1x384xf32>
      %c31_i32_87 = arith.constant 31 : i32
      %256 = tpu.dynamic_rotate %15 by %c31_i32_87 dim 1 : vector<1x384xf32>, i32 -> vector<1x384xf32>
      %c60 = arith.constant 60 : index
      %c0_88 = arith.constant 0 : index
      %257 = vector.load %arg2[%c60, %c0_88] : memref<98x384xf32, #tpu.memory_space<vmem>>, vector<1x384xf32>
      %258 = arith.mulf %257, %256 : vector<1x384xf32>
      %259 = arith.addf %255, %258 : vector<1x384xf32>
      %c30_i32_89 = arith.constant 30 : i32
      %260 = tpu.dynamic_rotate %15 by %c30_i32_89 dim 1 : vector<1x384xf32>, i32 -> vector<1x384xf32>
      %c61 = arith.constant 61 : index
      %c0_90 = arith.constant 0 : index
      %261 = vector.load %arg2[%c61, %c0_90] : memref<98x384xf32, #tpu.memory_space<vmem>>, vector<1x384xf32>
      %262 = arith.mulf %261, %260 : vector<1x384xf32>
      %263 = arith.addf %259, %262 : vector<1x384xf32>
      %c29_i32_91 = arith.constant 29 : i32
      %264 = tpu.dynamic_rotate %15 by %c29_i32_91 dim 1 : vector<1x384xf32>, i32 -> vector<1x384xf32>
      %c62 = arith.constant 62 : index
      %c0_92 = arith.constant 0 : index
      %265 = vector.load %arg2[%c62, %c0_92] : memref<98x384xf32, #tpu.memory_space<vmem>>, vector<1x384xf32>
      %266 = arith.mulf %265, %264 : vector<1x384xf32>
      %267 = arith.addf %263, %266 : vector<1x384xf32>
      %c19_i32_93 = arith.constant 19 : i32
      %268 = tpu.dynamic_rotate %15 by %c19_i32_93 dim 1 : vector<1x384xf32>, i32 -> vector<1x384xf32>
      %c63 = arith.constant 63 : index
      %c0_94 = arith.constant 0 : index
      %269 = vector.load %arg2[%c63, %c0_94] : memref<98x384xf32, #tpu.memory_space<vmem>>, vector<1x384xf32>
      %270 = arith.mulf %269, %268 : vector<1x384xf32>
      %271 = arith.addf %267, %270 : vector<1x384xf32>
      %c18_i32_95 = arith.constant 18 : i32
      %272 = tpu.dynamic_rotate %15 by %c18_i32_95 dim 1 : vector<1x384xf32>, i32 -> vector<1x384xf32>
      %c64 = arith.constant 64 : index
      %c0_96 = arith.constant 0 : index
      %273 = vector.load %arg2[%c64, %c0_96] : memref<98x384xf32, #tpu.memory_space<vmem>>, vector<1x384xf32>
      %274 = arith.mulf %273, %272 : vector<1x384xf32>
      %275 = arith.addf %271, %274 : vector<1x384xf32>
      %c17_i32_97 = arith.constant 17 : i32
      %276 = tpu.dynamic_rotate %15 by %c17_i32_97 dim 1 : vector<1x384xf32>, i32 -> vector<1x384xf32>
      %c65 = arith.constant 65 : index
      %c0_98 = arith.constant 0 : index
      %277 = vector.load %arg2[%c65, %c0_98] : memref<98x384xf32, #tpu.memory_space<vmem>>, vector<1x384xf32>
      %278 = arith.mulf %277, %276 : vector<1x384xf32>
      %279 = arith.addf %275, %278 : vector<1x384xf32>
      %c16_i32_99 = arith.constant 16 : i32
      %280 = tpu.dynamic_rotate %15 by %c16_i32_99 dim 1 : vector<1x384xf32>, i32 -> vector<1x384xf32>
      %c66 = arith.constant 66 : index
      %c0_100 = arith.constant 0 : index
      %281 = vector.load %arg2[%c66, %c0_100] : memref<98x384xf32, #tpu.memory_space<vmem>>, vector<1x384xf32>
      %282 = arith.mulf %281, %280 : vector<1x384xf32>
      %283 = arith.addf %279, %282 : vector<1x384xf32>
      %c15_i32_101 = arith.constant 15 : i32
      %284 = tpu.dynamic_rotate %15 by %c15_i32_101 dim 1 : vector<1x384xf32>, i32 -> vector<1x384xf32>
      %c67 = arith.constant 67 : index
      %c0_102 = arith.constant 0 : index
      %285 = vector.load %arg2[%c67, %c0_102] : memref<98x384xf32, #tpu.memory_space<vmem>>, vector<1x384xf32>
      %286 = arith.mulf %285, %284 : vector<1x384xf32>
      %287 = arith.addf %283, %286 : vector<1x384xf32>
      %c14_i32_103 = arith.constant 14 : i32
      %288 = tpu.dynamic_rotate %15 by %c14_i32_103 dim 1 : vector<1x384xf32>, i32 -> vector<1x384xf32>
      %c68 = arith.constant 68 : index
      %c0_104 = arith.constant 0 : index
      %289 = vector.load %arg2[%c68, %c0_104] : memref<98x384xf32, #tpu.memory_space<vmem>>, vector<1x384xf32>
      %290 = arith.mulf %289, %288 : vector<1x384xf32>
      %291 = arith.addf %287, %290 : vector<1x384xf32>
      %c13_i32_105 = arith.constant 13 : i32
      %292 = tpu.dynamic_rotate %15 by %c13_i32_105 dim 1 : vector<1x384xf32>, i32 -> vector<1x384xf32>
      %c69 = arith.constant 69 : index
      %c0_106 = arith.constant 0 : index
      %293 = vector.load %arg2[%c69, %c0_106] : memref<98x384xf32, #tpu.memory_space<vmem>>, vector<1x384xf32>
      %294 = arith.mulf %293, %292 : vector<1x384xf32>
      %295 = arith.addf %291, %294 : vector<1x384xf32>
      %c3_i32_107 = arith.constant 3 : i32
      %296 = tpu.dynamic_rotate %15 by %c3_i32_107 dim 1 : vector<1x384xf32>, i32 -> vector<1x384xf32>
      %c70 = arith.constant 70 : index
      %c0_108 = arith.constant 0 : index
      %297 = vector.load %arg2[%c70, %c0_108] : memref<98x384xf32, #tpu.memory_space<vmem>>, vector<1x384xf32>
      %298 = arith.mulf %297, %296 : vector<1x384xf32>
      %299 = arith.addf %295, %298 : vector<1x384xf32>
      %c2_i32_109 = arith.constant 2 : i32
      %300 = tpu.dynamic_rotate %15 by %c2_i32_109 dim 1 : vector<1x384xf32>, i32 -> vector<1x384xf32>
      %c71 = arith.constant 71 : index
      %c0_110 = arith.constant 0 : index
      %301 = vector.load %arg2[%c71, %c0_110] : memref<98x384xf32, #tpu.memory_space<vmem>>, vector<1x384xf32>
      %302 = arith.mulf %301, %300 : vector<1x384xf32>
      %303 = arith.addf %299, %302 : vector<1x384xf32>
      %c1_i32_111 = arith.constant 1 : i32
      %304 = tpu.dynamic_rotate %15 by %c1_i32_111 dim 1 : vector<1x384xf32>, i32 -> vector<1x384xf32>
      %c72 = arith.constant 72 : index
      %c0_112 = arith.constant 0 : index
      %305 = vector.load %arg2[%c72, %c0_112] : memref<98x384xf32, #tpu.memory_space<vmem>>, vector<1x384xf32>
      %306 = arith.mulf %305, %304 : vector<1x384xf32>
      %307 = arith.addf %303, %306 : vector<1x384xf32>
      %c73 = arith.constant 73 : index
      %c0_113 = arith.constant 0 : index
      %308 = vector.load %arg2[%c73, %c0_113] : memref<98x384xf32, #tpu.memory_space<vmem>>, vector<1x384xf32>
      %309 = arith.mulf %308, %15 : vector<1x384xf32>
      %310 = arith.addf %307, %309 : vector<1x384xf32>
      %c383_i32_114 = arith.constant 383 : i32
      %311 = tpu.dynamic_rotate %15 by %c383_i32_114 dim 1 : vector<1x384xf32>, i32 -> vector<1x384xf32>
      %c74 = arith.constant 74 : index
      %c0_115 = arith.constant 0 : index
      %312 = vector.load %arg2[%c74, %c0_115] : memref<98x384xf32, #tpu.memory_space<vmem>>, vector<1x384xf32>
      %313 = arith.mulf %312, %311 : vector<1x384xf32>
      %314 = arith.addf %310, %313 : vector<1x384xf32>
      %c382_i32_116 = arith.constant 382 : i32
      %315 = tpu.dynamic_rotate %15 by %c382_i32_116 dim 1 : vector<1x384xf32>, i32 -> vector<1x384xf32>
      %c75 = arith.constant 75 : index
      %c0_117 = arith.constant 0 : index
      %316 = vector.load %arg2[%c75, %c0_117] : memref<98x384xf32, #tpu.memory_space<vmem>>, vector<1x384xf32>
      %317 = arith.mulf %316, %315 : vector<1x384xf32>
      %318 = arith.addf %314, %317 : vector<1x384xf32>
      %c381_i32_118 = arith.constant 381 : i32
      %319 = tpu.dynamic_rotate %15 by %c381_i32_118 dim 1 : vector<1x384xf32>, i32 -> vector<1x384xf32>
      %c76 = arith.constant 76 : index
      %c0_119 = arith.constant 0 : index
      %320 = vector.load %arg2[%c76, %c0_119] : memref<98x384xf32, #tpu.memory_space<vmem>>, vector<1x384xf32>
      %321 = arith.mulf %320, %319 : vector<1x384xf32>
      %322 = arith.addf %318, %321 : vector<1x384xf32>
      %c371_i32_120 = arith.constant 371 : i32
      %323 = tpu.dynamic_rotate %15 by %c371_i32_120 dim 1 : vector<1x384xf32>, i32 -> vector<1x384xf32>
      %c77 = arith.constant 77 : index
      %c0_121 = arith.constant 0 : index
      %324 = vector.load %arg2[%c77, %c0_121] : memref<98x384xf32, #tpu.memory_space<vmem>>, vector<1x384xf32>
      %325 = arith.mulf %324, %323 : vector<1x384xf32>
      %326 = arith.addf %322, %325 : vector<1x384xf32>
      %c370_i32_122 = arith.constant 370 : i32
      %327 = tpu.dynamic_rotate %15 by %c370_i32_122 dim 1 : vector<1x384xf32>, i32 -> vector<1x384xf32>
      %c78 = arith.constant 78 : index
      %c0_123 = arith.constant 0 : index
      %328 = vector.load %arg2[%c78, %c0_123] : memref<98x384xf32, #tpu.memory_space<vmem>>, vector<1x384xf32>
      %329 = arith.mulf %328, %327 : vector<1x384xf32>
      %330 = arith.addf %326, %329 : vector<1x384xf32>
      %c369_i32_124 = arith.constant 369 : i32
      %331 = tpu.dynamic_rotate %15 by %c369_i32_124 dim 1 : vector<1x384xf32>, i32 -> vector<1x384xf32>
      %c79 = arith.constant 79 : index
      %c0_125 = arith.constant 0 : index
      %332 = vector.load %arg2[%c79, %c0_125] : memref<98x384xf32, #tpu.memory_space<vmem>>, vector<1x384xf32>
      %333 = arith.mulf %332, %331 : vector<1x384xf32>
      %334 = arith.addf %330, %333 : vector<1x384xf32>
      %c368_i32_126 = arith.constant 368 : i32
      %335 = tpu.dynamic_rotate %15 by %c368_i32_126 dim 1 : vector<1x384xf32>, i32 -> vector<1x384xf32>
      %c80 = arith.constant 80 : index
      %c0_127 = arith.constant 0 : index
      %336 = vector.load %arg2[%c80, %c0_127] : memref<98x384xf32, #tpu.memory_space<vmem>>, vector<1x384xf32>
      %337 = arith.mulf %336, %335 : vector<1x384xf32>
      %338 = arith.addf %334, %337 : vector<1x384xf32>
      %c367_i32_128 = arith.constant 367 : i32
      %339 = tpu.dynamic_rotate %15 by %c367_i32_128 dim 1 : vector<1x384xf32>, i32 -> vector<1x384xf32>
      %c81 = arith.constant 81 : index
      %c0_129 = arith.constant 0 : index
      %340 = vector.load %arg2[%c81, %c0_129] : memref<98x384xf32, #tpu.memory_space<vmem>>, vector<1x384xf32>
      %341 = arith.mulf %340, %339 : vector<1x384xf32>
      %342 = arith.addf %338, %341 : vector<1x384xf32>
      %c366_i32_130 = arith.constant 366 : i32
      %343 = tpu.dynamic_rotate %15 by %c366_i32_130 dim 1 : vector<1x384xf32>, i32 -> vector<1x384xf32>
      %c82 = arith.constant 82 : index
      %c0_131 = arith.constant 0 : index
      %344 = vector.load %arg2[%c82, %c0_131] : memref<98x384xf32, #tpu.memory_space<vmem>>, vector<1x384xf32>
      %345 = arith.mulf %344, %343 : vector<1x384xf32>
      %346 = arith.addf %342, %345 : vector<1x384xf32>
      %c365_i32_132 = arith.constant 365 : i32
      %347 = tpu.dynamic_rotate %15 by %c365_i32_132 dim 1 : vector<1x384xf32>, i32 -> vector<1x384xf32>
      %c83 = arith.constant 83 : index
      %c0_133 = arith.constant 0 : index
      %348 = vector.load %arg2[%c83, %c0_133] : memref<98x384xf32, #tpu.memory_space<vmem>>, vector<1x384xf32>
      %349 = arith.mulf %348, %347 : vector<1x384xf32>
      %350 = arith.addf %346, %349 : vector<1x384xf32>
      %c355_i32_134 = arith.constant 355 : i32
      %351 = tpu.dynamic_rotate %15 by %c355_i32_134 dim 1 : vector<1x384xf32>, i32 -> vector<1x384xf32>
      %c84 = arith.constant 84 : index
      %c0_135 = arith.constant 0 : index
      %352 = vector.load %arg2[%c84, %c0_135] : memref<98x384xf32, #tpu.memory_space<vmem>>, vector<1x384xf32>
      %353 = arith.mulf %352, %351 : vector<1x384xf32>
      %354 = arith.addf %350, %353 : vector<1x384xf32>
      %c354_i32_136 = arith.constant 354 : i32
      %355 = tpu.dynamic_rotate %15 by %c354_i32_136 dim 1 : vector<1x384xf32>, i32 -> vector<1x384xf32>
      %c85 = arith.constant 85 : index
      %c0_137 = arith.constant 0 : index
      %356 = vector.load %arg2[%c85, %c0_137] : memref<98x384xf32, #tpu.memory_space<vmem>>, vector<1x384xf32>
      %357 = arith.mulf %356, %355 : vector<1x384xf32>
      %358 = arith.addf %354, %357 : vector<1x384xf32>
      %c353_i32_138 = arith.constant 353 : i32
      %359 = tpu.dynamic_rotate %15 by %c353_i32_138 dim 1 : vector<1x384xf32>, i32 -> vector<1x384xf32>
      %c86 = arith.constant 86 : index
      %c0_139 = arith.constant 0 : index
      %360 = vector.load %arg2[%c86, %c0_139] : memref<98x384xf32, #tpu.memory_space<vmem>>, vector<1x384xf32>
      %361 = arith.mulf %360, %359 : vector<1x384xf32>
      %362 = arith.addf %358, %361 : vector<1x384xf32>
      %c352_i32_140 = arith.constant 352 : i32
      %363 = tpu.dynamic_rotate %15 by %c352_i32_140 dim 1 : vector<1x384xf32>, i32 -> vector<1x384xf32>
      %c87 = arith.constant 87 : index
      %c0_141 = arith.constant 0 : index
      %364 = vector.load %arg2[%c87, %c0_141] : memref<98x384xf32, #tpu.memory_space<vmem>>, vector<1x384xf32>
      %365 = arith.mulf %364, %363 : vector<1x384xf32>
      %366 = arith.addf %362, %365 : vector<1x384xf32>
      %c351_i32_142 = arith.constant 351 : i32
      %367 = tpu.dynamic_rotate %15 by %c351_i32_142 dim 1 : vector<1x384xf32>, i32 -> vector<1x384xf32>
      %c88 = arith.constant 88 : index
      %c0_143 = arith.constant 0 : index
      %368 = vector.load %arg2[%c88, %c0_143] : memref<98x384xf32, #tpu.memory_space<vmem>>, vector<1x384xf32>
      %369 = arith.mulf %368, %367 : vector<1x384xf32>
      %370 = arith.addf %366, %369 : vector<1x384xf32>
      %c350_i32_144 = arith.constant 350 : i32
      %371 = tpu.dynamic_rotate %15 by %c350_i32_144 dim 1 : vector<1x384xf32>, i32 -> vector<1x384xf32>
      %c89 = arith.constant 89 : index
      %c0_145 = arith.constant 0 : index
      %372 = vector.load %arg2[%c89, %c0_145] : memref<98x384xf32, #tpu.memory_space<vmem>>, vector<1x384xf32>
      %373 = arith.mulf %372, %371 : vector<1x384xf32>
      %374 = arith.addf %370, %373 : vector<1x384xf32>
      %c349_i32_146 = arith.constant 349 : i32
      %375 = tpu.dynamic_rotate %15 by %c349_i32_146 dim 1 : vector<1x384xf32>, i32 -> vector<1x384xf32>
      %c90 = arith.constant 90 : index
      %c0_147 = arith.constant 0 : index
      %376 = vector.load %arg2[%c90, %c0_147] : memref<98x384xf32, #tpu.memory_space<vmem>>, vector<1x384xf32>
      %377 = arith.mulf %376, %375 : vector<1x384xf32>
      %378 = arith.addf %374, %377 : vector<1x384xf32>
      %c339_i32_148 = arith.constant 339 : i32
      %379 = tpu.dynamic_rotate %15 by %c339_i32_148 dim 1 : vector<1x384xf32>, i32 -> vector<1x384xf32>
      %c91 = arith.constant 91 : index
      %c0_149 = arith.constant 0 : index
      %380 = vector.load %arg2[%c91, %c0_149] : memref<98x384xf32, #tpu.memory_space<vmem>>, vector<1x384xf32>
      %381 = arith.mulf %380, %379 : vector<1x384xf32>
      %382 = arith.addf %378, %381 : vector<1x384xf32>
      %c338_i32_150 = arith.constant 338 : i32
      %383 = tpu.dynamic_rotate %15 by %c338_i32_150 dim 1 : vector<1x384xf32>, i32 -> vector<1x384xf32>
      %c92 = arith.constant 92 : index
      %c0_151 = arith.constant 0 : index
      %384 = vector.load %arg2[%c92, %c0_151] : memref<98x384xf32, #tpu.memory_space<vmem>>, vector<1x384xf32>
      %385 = arith.mulf %384, %383 : vector<1x384xf32>
      %386 = arith.addf %382, %385 : vector<1x384xf32>
      %c337_i32_152 = arith.constant 337 : i32
      %387 = tpu.dynamic_rotate %15 by %c337_i32_152 dim 1 : vector<1x384xf32>, i32 -> vector<1x384xf32>
      %c93 = arith.constant 93 : index
      %c0_153 = arith.constant 0 : index
      %388 = vector.load %arg2[%c93, %c0_153] : memref<98x384xf32, #tpu.memory_space<vmem>>, vector<1x384xf32>
      %389 = arith.mulf %388, %387 : vector<1x384xf32>
      %390 = arith.addf %386, %389 : vector<1x384xf32>
      %c336_i32_154 = arith.constant 336 : i32
      %391 = tpu.dynamic_rotate %15 by %c336_i32_154 dim 1 : vector<1x384xf32>, i32 -> vector<1x384xf32>
      %c94 = arith.constant 94 : index
      %c0_155 = arith.constant 0 : index
      %392 = vector.load %arg2[%c94, %c0_155] : memref<98x384xf32, #tpu.memory_space<vmem>>, vector<1x384xf32>
      %393 = arith.mulf %392, %391 : vector<1x384xf32>
      %394 = arith.addf %390, %393 : vector<1x384xf32>
      %c335_i32_156 = arith.constant 335 : i32
      %395 = tpu.dynamic_rotate %15 by %c335_i32_156 dim 1 : vector<1x384xf32>, i32 -> vector<1x384xf32>
      %c95 = arith.constant 95 : index
      %c0_157 = arith.constant 0 : index
      %396 = vector.load %arg2[%c95, %c0_157] : memref<98x384xf32, #tpu.memory_space<vmem>>, vector<1x384xf32>
      %397 = arith.mulf %396, %395 : vector<1x384xf32>
      %398 = arith.addf %394, %397 : vector<1x384xf32>
      %c334_i32_158 = arith.constant 334 : i32
      %399 = tpu.dynamic_rotate %15 by %c334_i32_158 dim 1 : vector<1x384xf32>, i32 -> vector<1x384xf32>
      %c96 = arith.constant 96 : index
      %c0_159 = arith.constant 0 : index
      %400 = vector.load %arg2[%c96, %c0_159] : memref<98x384xf32, #tpu.memory_space<vmem>>, vector<1x384xf32>
      %401 = arith.mulf %400, %399 : vector<1x384xf32>
      %402 = arith.addf %398, %401 : vector<1x384xf32>
      %c333_i32_160 = arith.constant 333 : i32
      %403 = tpu.dynamic_rotate %15 by %c333_i32_160 dim 1 : vector<1x384xf32>, i32 -> vector<1x384xf32>
      %c97 = arith.constant 97 : index
      %c0_161 = arith.constant 0 : index
      %404 = vector.load %arg2[%c97, %c0_161] : memref<98x384xf32, #tpu.memory_space<vmem>>, vector<1x384xf32>
      %405 = arith.mulf %404, %403 : vector<1x384xf32>
      %406 = arith.addf %402, %405 : vector<1x384xf32>
      %407 = vector.extract_strided_slice %406 {offsets = [0, 0], sizes = [1, 256], strides = [1, 1]} : vector<1x384xf32> to vector<1x256xf32>
      %408 = arith.negf %407 : vector<1x256xf32>
      %409 = math.exp %408 : vector<1x256xf32>
      %cst_162 = arith.constant 1.000000e+00 : f32
      %410 = vector.broadcast %cst_162 : f32 to vector<1x256xf32>
      %411 = arith.addf %410, %409 : vector<1x256xf32>
      %412 = arith.divf %410, %411 : vector<1x256xf32>
      %c0_163 = arith.constant 0 : index
      %c0_164 = arith.constant 0 : index
      %c0_165 = arith.constant 0 : index
      %413 = vector.load %arg4[%c0_163, %c0_164, %c0_165] : memref<1x1x256xf32, #tpu.memory_space<vmem>>, vector<1x1x256xf32>
      %414 = vector.shape_cast %413 : vector<1x1x256xf32> to vector<1x256xf32>
      %415 = vector.shape_cast %412 : vector<1x256xf32> to vector<1x1x256xf32>
      tpu.vector_store %arg4[%c0_163, %c0_164, %c0_165], %415 {strides = array<i32>} : memref<1x1x256xf32, #tpu.memory_space<vmem>>, vector<1x1x256xf32>,
    } else {
    }
    return
  }
  func.func @transform_0(%arg0: i32, %arg1: i32) -> (i32, i32) {
    %c0_i32 = arith.constant 0 : i32
    %c0_i32_0 = arith.constant 0 : i32
    %c0_i32_1 = arith.constant 0 : i32
    return %c0_i32, %c0_i32_0 : i32, i32
  }
  func.func @transform_1(%arg0: i32, %arg1: i32) -> (i32, i32, i32) {
    %c0_i32 = arith.constant 0 : i32
    %c0_i32_0 = arith.constant 0 : i32
    return %arg0, %arg1, %c0_i32 : i32, i32, i32
  }
  func.func @transform_2(%arg0: i32, %arg1: i32) -> (i32, i32, i32) {
    %c0_i32 = arith.constant 0 : i32
    %c0_i32_0 = arith.constant 0 : i32
    %c0_i32_1 = arith.constant 0 : i32
    return %arg0, %c0_i32, %c0_i32_0 : i32, i32, i32
  }
}

</mosaic_0001>

<llo_original>
// kernel: tpu_custom_call.1
$region0: #{tpu_custom_call.1}
  #allocation0 [shape = 'u32[]', space=smem, size = 0x4, offset = 0x4, fixed_abs, tag = 'smem constant byte address 0x4 - core index']
  #allocation1 [shape = 'u32[72,128]{1,0:T(1,128)}', space=vmem, size = 0x9000, scoped, tag = 'internal scratch']
  #allocation2 [shape = 'f32[2,1,384]{2,1,0:T(1,128)}', space=vmem, size = 0xc00, scoped, tag = 'scratch operand']
  %s0 = inlined_call_operand.hbm [shape: f32[98,384], index: 0, kind: input, shape index: {}]
  %s1 = inlined_call_operand.hbm [shape: f32[2,4,256], index: 1, kind: input, shape index: {}]
  %s2 = inlined_call_operand.hbm [shape: f32[2,1,256], index: 2, kind: output, shape index: {}]
  %s3 = sld [smem:[#allocation0]]
  $region61: #{tpu_custom_call.1} parent=0
    _
  %s5 = ssub.s32 1, %s3
  %s6 = scalar_select 0, %s5, %s3
  $region1: #{tpu_custom_call.1} parent=0
    #allocation3 [shape = 'u8[159744]{0}', space=vmem, size = 0x27000, scoped, tag = 'input window, operand 0, single buffered']
    #allocation4 [shape = 's32[2]{0}', space=sflag, size = 0x8, scoped, tag = 'scoped memory for tpu_custom_call.1']
    #allocation5 [shape = 's32[2]{0}', space=sflag, size = 0x8, scoped, tag = 'scoped memory for tpu_custom_call.1']
    #allocation6 [shape = 'u8[8192]{0}', space=vmem, size = 0x2000, scoped, tag = 'input window, operand 1']
    #allocation7 [shape = 's32[2]{0}', space=sflag, size = 0x8, scoped, tag = 'scoped memory for tpu_custom_call.1']
    #allocation8 [shape = 'u8[2048]{0}', space=vmem, size = 0x800, scoped, tag = 'output window, operand 0']
    %7 = vsyncpa [#allocation4], 0
    %8 = vsyncpa [#allocation7], 0
    %s9 = scalar_lea.sflag [#allocation7], 1
    %10 = vsyncpa %s9, 0
    %11 = vsyncpa [#allocation5], 0
    %s12 = scalar_lea.sflag [#allocation5], 1
    %13 = vsyncpa %s12, 0
    loop: start=0, step=1, limit=4
    $region2: #{tpu_custom_call.1} parent=1 // loop_pre_header
      _
    $region3: #{tpu_custom_call.1} parent=1 // loop_header
      %s15 = sphi 0, %s19
      %p16 = scmp.ge.s32.totalorder %s15, 4
      %s22 = sphi 0, %s34
      %s23 = sphi 0, %s30
      %s24 = sphi 0, %s22
      %s25 = sphi 0, %s23
      %s26 = sphi 0, %s24
      %s27 = sphi 0, %s25
      %s35 = sphi 0, %s35
      %s37 = sphi 0, %s35
      %s38 = sphi 0, %s37
      %s52 = sphi 0, %s38
      %s60 = sphi 0, %s62
      %s63 = sphi 0, %s60
      %s64 = sphi 0, %s63
      %s80 = sphi 0, %s64
      %s86 = sphi 0, %s88
      %s89 = sphi 0, %s86
      %s90 = sphi 0, %s89
      %s106 = sphi 0, %s90
    $region4: #{tpu_custom_call.1} parent=1 // loop_header_branch
      %18 = sbr.rel (%p16) target = $region8
    $region5: #{tpu_custom_call.1} parent=1 // loop_body
      %s20 = ssub.s32 %s15, 1
      %s21 = ssub.s32 %s15, 2
      %s28 = sadd.s32 1, %s23
      %p29 = scmp.ge.s32.totalorder %s28, 1
      %s30 = scalar_select %p29, 0, %s28
      %s31 = sadd.s32 1, %s22
      %s32 = scalar_select %p29, %s31, %s22
      %p33 = scmp.ge.s32.totalorder %s32, 2
      %s34 = scalar_select %p33, 0, %s32
      %s36 = sadd.s32 %s35, 1
      %p39 = scmp.eq.s32.totalorder %s15, 1
      %p40 = scmp.ne.s32.totalorder %s35, %s37
      %p41 = scmp.eq.s32.totalorder %s15, 0
      %p42 = por %p40, %p41
      %p43 = scmp.ne.s32.totalorder %s35, %s37
      %p44 = scmp.eq.s32.totalorder %s20, 1
      %p45 = por %p43, %p44
      %p46 = scmp.ne.s32.totalorder %s37, %s38
      %p47 = scmp.eq.s32.totalorder %s20, 0
      %p48 = por %p46, %p47
      %p49 = scmp.ne.s32.totalorder %s37, %s38
      %p50 = scmp.eq.s32.totalorder %s21, 1
      %p51 = por %p49, %p50
      %p53 = scmp.ne.s32.totalorder %s38, %s52
      %p54 = scmp.eq.s32.totalorder %s21, 0
      %p55 = por %p53, %p54
      %s56 = ssub.s32 %s22, %s34
      %s57 = ssub.s32 %s23, %s30
      %s58 = sor.u32 %s56, %s57
      %p59 = scmp.eq.s32.totalorder %s58, 0
      %s61 = sadd.s32 %s60, 1
      %s62 = scalar_select %p59, %s60, %s61
      %p65 = pneg %p59
      %p66 = scmp.eq.s32.totalorder %s15, 1
      %p67 = por %p65, %p66
      %p68 = scmp.ne.s32.totalorder %s60, %s63
      %p69 = scmp.eq.s32.totalorder %s15, 0
      %p70 = por %p68, %p69
      %p71 = scmp.ne.s32.totalorder %s60, %s63
      %p72 = scmp.eq.s32.totalorder %s20, 1
      %p73 = por %p71, %p72
      %p74 = scmp.ne.s32.totalorder %s63, %s64
      %p75 = scmp.eq.s32.totalorder %s20, 0
      %p76 = por %p74, %p75
      %p77 = scmp.ne.s32.totalorder %s63, %s64
      %p78 = scmp.eq.s32.totalorder %s21, 1
      %p79 = por %p77, %p78
      %p81 = scmp.ne.s32.totalorder %s64, %s80
      %p82 = scmp.eq.s32.totalorder %s21, 0
      %p83 = por %p81, %p82
      %s84 = ssub.s32 %s22, %s34
      %p85 = scmp.eq.s32.totalorder %s84, 0
      %s87 = sadd.s32 %s86, 1
      %s88 = scalar_select %p85, %s86, %s87
      %p91 = pneg %p85
      %p92 = scmp.eq.s32.totalorder %s15, 1
      %p93 = por %p91, %p92
      %p94 = scmp.ne.s32.totalorder %s86, %s89
      %p95 = scmp.eq.s32.totalorder %s15, 0
      %p96 = por %p94, %p95
      %p97 = scmp.ne.s32.totalorder %s86, %s89
      %p98 = scmp.eq.s32.totalorder %s20, 1
      %p99 = por %p97, %p98
      %p100 = scmp.ne.s32.totalorder %s89, %s90
      %p101 = scmp.eq.s32.totalorder %s20, 0
      %p102 = por %p100, %p101
      %p103 = scmp.ne.s32.totalorder %s89, %s90
      %p104 = scmp.eq.s32.totalorder %s21, 1
      %p105 = por %p103, %p104
      %p107 = scmp.ne.s32.totalorder %s90, %s106
      %p108 = scmp.eq.s32.totalorder %s21, 0
      %p109 = por %p107, %p108
      %p110 = scmp.le.s32.totalorder 1, %s15
      %p111 = scmp.lt.s32.totalorder %s15, 3
      %p112 = pnand %p110, %p111
      %p113 = pneg %p112
      // Predicated region
      $region9: #{tpu_custom_call.1} parent=5 // pred_check
        _
      $region10: #{tpu_custom_call.1} parent=5 // pred_check_branch
        %115 = sbr.rel (%p112) target = $region12
      $region11: #{tpu_custom_call.1} parent=5 // pred_region
        %s116 = ssub.s32 %s15, 1
        // Predicated region
        $region13: #{tpu_custom_call.1} parent=11 // pred_check
          %p117 = pneg %p48
        $region14: #{tpu_custom_call.1} parent=11 // pred_check_branch
          %119 = sbr.rel (%p117) target = $region16
        $region15: #{tpu_custom_call.1} parent=11 // pred_region
          %121 = vsyncadd [#allocation4], 0
          %s122 = sshll.u32 %s0, 4
          %s123 = int_to_ptr.hbm [resolvable:$true] %s122
          %s124 = sshll.u32 [#allocation3], 4
          %s125 = int_to_ptr.vmem [resolvable:$true] %s124
          %130 = dma.hbm_to_vmem [thread:$0]  %s123, 4992, %s125, [#allocation4], 384, 384, 24
        $region16: #{tpu_custom_call.1} parent=11 // pred_fallthru
          _
      $region12: #{tpu_custom_call.1} parent=5 // pred_fallthru
        _
      %p131 = scmp.lt.s32.totalorder %s15, 2
      // Predicated region
      $region17: #{tpu_custom_call.1} parent=5 // pred_check
        %p132 = pneg %p131
      $region18: #{tpu_custom_call.1} parent=5 // pred_check_branch
        %134 = sbr.rel (%p132) target = $region20
      $region19: #{tpu_custom_call.1} parent=5 // pred_region
        // Predicated region
        $region21: #{tpu_custom_call.1} parent=19 // pred_check
          %p135 = pneg %p70
        $region22: #{tpu_custom_call.1} parent=19 // pred_check_branch
          %137 = sbr.rel (%p135) target = $region24
        $region23: #{tpu_custom_call.1} parent=19 // pred_region
          %s138 = sand.u32 %s60, 1
          %s139 = scalar_lea.sflag [#allocation7], %s138
          %s140 = sand.u32 %s60, 1
          %s141 = smul.addr %s140, 8
          %s142 = scalar_lea.vmem [#allocation6], %s141
          %144 = vsyncadd %s139, 0
          %s145 = smul.addr %s23, 2
          %s146 = smul.addr %s22, 2
          %s147 = sadd.s32 %s145, %s146
          %s148 = smul.addr %s147, 4
          %s149 = scalar_lea.hbm %s1, %s148
          %s151 = sshll.u32 %s149, 4
          %s152 = int_to_ptr.hbm [resolvable:$true] %s151
          %s153 = sshll.u32 %s142, 4
          %s154 = int_to_ptr.vmem [resolvable:$true] %s153
          %156 = dma.hbm_to_vmem [thread:$0]  %s152, 128, %s154, %s139
        $region24: #{tpu_custom_call.1} parent=19 // pred_fallthru
          _
      $region20: #{tpu_custom_call.1} parent=5 // pred_fallthru
        _
      %p157 = scmp.le.s32.totalorder 1, %s15
      %p158 = scmp.lt.s32.totalorder %s15, 3
      %p159 = pnand %p157, %p158
      %p160 = pneg %p159
      // Predicated region
      $region25: #{tpu_custom_call.1} parent=5 // pred_check
        _
      $region26: #{tpu_custom_call.1} parent=5 // pred_check_branch
        %162 = sbr.rel (%p159) target = $region28
      $region27: #{tpu_custom_call.1} parent=5 // pred_region
        %s163 = ssub.s32 %s15, 1
        // Predicated region
        $region29: #{tpu_custom_call.1} parent=27 // pred_check
          %p164 = pneg %p48
        $region30: #{tpu_custom_call.1} parent=27 // pred_check_branch
          %166 = sbr.rel (%p164) target = $region32
        $region31: #{tpu_custom_call.1} parent=27 // pred_region
          %168 = dma.done [#allocation4], 4992
        $region32: #{tpu_custom_call.1} parent=27 // pred_fallthru
          _
        %s169 = sand.u32 %s63, 1
        %s170 = scalar_lea.sflag [#allocation7], %s169
        %s171 = sand.u32 %s63, 1
        %s172 = smul.addr %s171, 8
        %s173 = scalar_lea.vmem [#allocation6], %s172
        // Predicated region
        $region33: #{tpu_custom_call.1} parent=27 // pred_check
          %p174 = pneg %p76
        $region34: #{tpu_custom_call.1} parent=27 // pred_check_branch
          %176 = sbr.rel (%p174) target = $region36
        $region35: #{tpu_custom_call.1} parent=27 // pred_region
          %178 = dma.done %s170, 128
        $region36: #{tpu_custom_call.1} parent=27 // pred_fallthru
          _
        %p179 = pneg %p48
        %p180 = pneg %p45
        %s181 = sand.u32 %s63, 1
        %s182 = scalar_lea.sflag [#allocation7], %s181
        %s183 = sand.u32 %s63, 1
        %s184 = smul.addr %s183, 8
        %s185 = scalar_lea.vmem [#allocation6], %s184
        %p186 = pneg %p76
        %p187 = pneg %p73
        %p188 = pneg %p102
        %p189 = pneg %p99
        %s190 = sand.u32 %s89, 1
        %s191 = scalar_lea.sflag [#allocation5], %s190
        %s192 = sand.u32 %s89, 1
        %s193 = smul.addr %s192, 2
        %s194 = scalar_lea.vmem [#allocation8], %s193
        %v195 = vld [vmem:[%s173] sm:$0xff]
        %197 = vst [vmem:[#allocation1] ss:$2 sm:$0xff] %v195
        %v198 = vld.sshfl [vmem:[#allocation1] sm:$0xff pattern:$0x75316420]
        %v199 = vld.sshfl [vmem:[#allocation1 + $0x8] sm:$0xff pattern:$0x75316420]
        %vm202 = vcmask 1043456
        %v203 = vsel %vm202, %v198, 0.0
        %v204 = vrot.slane %v203, 4
        %v205 = vadd.f32 %v203, %v204
        %v206 = vrot.slane %v205, 2
        %v207 = vadd.f32 %v205, %v206
        %v208 = vrot.slane %v207, 1
        %v209 = vadd.f32 %v207, %v208
        %v210 = vsel %vm202, %v199, 0.0
        %v211 = vrot.slane %v210, 4
        %v212 = vadd.f32 %v210, %v211
        %v213 = vrot.slane %v212, 2
        %v214 = vadd.f32 %v212, %v213
        %v215 = vrot.slane %v214, 1
        %v216 = vadd.f32 %v214, %v215
        %217 = vst [vmem:[#allocation1] ss:$2 sm:$0xff] %v195
        %v218 = vld.sshfl [vmem:[#allocation1] sm:$0xff pattern:$0x75316420]
        %v219 = vld.sshfl [vmem:[#allocation1 + $0x8] sm:$0xff pattern:$0x75316420]
        %v222 = vsel %vm202, %v218, -inf
        %v223 = vrot.slane %v222, 4
        %v224 = vmax.f32 %v222, %v223
        %v225 = vrot.slane %v224, 2
        %v226 = vmax.f32 %v224, %v225
        %v227 = vrot.slane %v226, 1
        %v228 = vmax.f32 %v226, %v227
        %v229 = vsel %vm202, %v219, -inf
        %v230 = vrot.slane %v229, 4
        %v231 = vmax.f32 %v229, %v230
        %v232 = vrot.slane %v231, 2
        %v233 = vmax.f32 %v231, %v232
        %v234 = vrot.slane %v233, 1
        %v235 = vmax.f32 %v233, %v234
        %p236 = scmp.eq.s32.totalorder %s25, 0
        // Predicated region
        $region37: #{tpu_custom_call.1} parent=27 // pred_check
          %p237 = pneg %p236
        $region38: #{tpu_custom_call.1} parent=27 // pred_check_branch
          %239 = sbr.rel (%p237) target = $region40
        $region39: #{tpu_custom_call.1} parent=27 // pred_region
          %v242 = vrot.slane %v216, 7
          %vm243 = vcmask 1040384
          %v244 = vsel %vm243, %v209, %v242
          %v246 = vlaneseq
          %vm247 = vcmp.ge.s32.totalorder %v246, 0
          %vm248 = vcmp.lt.s32.totalorder %v246, 256
          %vm249 = vmand %vm247, %vm248
          %250 = vst.msk [vmem:[#allocation2] sm:$0x3] %vm249, %v244
          %v253 = vrot.slane %v235, 7
          %v254 = vsel %vm243, %v228, %v253
          %s256 = scalar_lea.vmem [#allocation2], 3
          %257 = vst.msk [vmem:[%s256] sm:$0x3] %vm249, %v254
          %vm258 = vcmp.lt.s32.totalorder %v246, 128
          %vm259 = vmand %vm247, %vm258
          %260 = vst.msk [vmem:[#allocation2 + $0x2] sm:$0x1] %vm259, 0.0
          %261 = vst.msk [vmem:[#allocation2 + $0x5] sm:$0x1] %vm259, 0.0
        $region40: #{tpu_custom_call.1} parent=27 // pred_fallthru
          _
        %p262 = scmp.gt.s32.totalorder %s25, 0
        // Predicated region
        $region41: #{tpu_custom_call.1} parent=27 // pred_check
          %p263 = pneg %p262
        $region42: #{tpu_custom_call.1} parent=27 // pred_check_branch
          %265 = sbr.rel (%p263) target = $region44
        $region43: #{tpu_custom_call.1} parent=27 // pred_region
          %v266 = vld [vmem:[#allocation2] sm:$0x3]
          %v269 = vrot.slane %v216, 7
          %vm270 = vcmask 1040384
          %v271 = vsel %vm270, %v209, %v269
          %v273 = vadd.f32 %v266, %v271
          %v274 = vlaneseq
          %vm275 = vcmp.ge.s32.totalorder %v274, 0
          %vm276 = vcmp.lt.s32.totalorder %v274, 256
          %vm277 = vmand %vm275, %vm276
          %278 = vst.msk [vmem:[#allocation2] sm:$0x3] %vm277, %v273
          %s279 = scalar_lea.vmem [#allocation2], 3
          %v280 = vld [vmem:[%s279] sm:$0x3]
          %v283 = vrot.slane %v235, 7
          %v284 = vsel %vm270, %v228, %v283
          %v286 = vmax.f32 %v280, %v284
          %287 = vst.msk [vmem:[%s279] sm:$0x3] %vm277, %v286
        $region44: #{tpu_custom_call.1} parent=27 // pred_fallthru
          _
        // Predicated region
        $region45: #{tpu_custom_call.1} parent=27 // pred_check
          %p288 = pneg %p236
        $region46: #{tpu_custom_call.1} parent=27 // pred_check_branch
          %290 = sbr.rel (%p288) target = $region48
        $region47: #{tpu_custom_call.1} parent=27 // pred_region
          %v291 = vld [vmem:[#allocation2] sm:$0x7]
          %s292 = scalar_lea.vmem [#allocation2], 3
          %v293 = vld [vmem:[%s292] sm:$0x7]
          %v295 = vperm.slane %v291, 0
          %v296 = vperm.slane %v291, 1
          %v297 = vperm.slane %v291, 2
          %301 = vrot.lane.b32.xlu0 %v295, 51
          %v302 = vpop.permute.xlu0 %301
          %303 = vrot.lane.b32.xlu0 %v296, 51
          %v304 = vpop.permute.xlu0 %303
          %305 = vrot.lane.b32.xlu0 %v297, 51
          %v306 = vpop.permute.xlu0 %305
          %v307 = vlaneseq
          %v308 = vand.u32 %v307, 127
          %vm309 = vcmp.lt.s32.totalorder %v308, 51
          %v310 = vsel %vm309, %v304, %v306
          %v311 = vsel %vm309, %v302, %v304
          %v312 = vsel %vm309, %v306, %v302
          %v313 = vld [vmem:[#allocation3] ss:$8 sm:$0x7]
          %v317 = vrot.slane %v311, 7
          %v318 = vrot.slane %v310, 6
          %vm319 = vcmask 1040384
          %v320 = vsel %vm319, %v312, %v317
          %vm321 = vcmask 1041408
          %v322 = vsel %vm321, %v320, %v318
          %v324 = vmul.f32 %v313, %v322
          %v325 = vadd.f32 %v324, 0.0
          %326 = vrot.lane.b32.xlu0 %v295, 50
          %v327 = vpop.permute.xlu0 %326
          %328 = vrot.lane.b32.xlu0 %v296, 50
          %v329 = vpop.permute.xlu0 %328
          %330 = vrot.lane.b32.xlu0 %v297, 50
          %v331 = vpop.permute.xlu0 %330
          %vm332 = vcmp.lt.s32.totalorder %v308, 50
          %v333 = vsel %vm332, %v329, %v331
          %v334 = vsel %vm332, %v327, %v329
          %v335 = vsel %vm332, %v331, %v327
          %s336 = scalar_lea.vmem [#allocation3], 1
          %v337 = vld [vmem:[%s336] ss:$8 sm:$0x7]
          %v341 = vrot.slane %v334, 7
          %v342 = vrot.slane %v333, 6
          %v343 = vsel %vm319, %v335, %v341
          %v344 = vsel %vm321, %v343, %v342
          %v346 = vmul.f32 %v337, %v344
          %v347 = vadd.f32 %v325, %v346
          %348 = vrot.lane.b32.xlu0 %v295, 49
          %v349 = vpop.permute.xlu0 %348
          %350 = vrot.lane.b32.xlu0 %v296, 49
          %v351 = vpop.permute.xlu0 %350
          %352 = vrot.lane.b32.xlu0 %v297, 49
          %v353 = vpop.permute.xlu0 %352
          %vm354 = vcmp.lt.s32.totalorder %v308, 49
          %v355 = vsel %vm354, %v351, %v353
          %v356 = vsel %vm354, %v349, %v351
          %v357 = vsel %vm354, %v353, %v349
          %s358 = scalar_lea.vmem [#allocation3], 2
          %v359 = vld [vmem:[%s358] ss:$8 sm:$0x7]
          %v363 = vrot.slane %v356, 7
          %v364 = vrot.slane %v355, 6
          %v365 = vsel %vm319, %v357, %v363
          %v366 = vsel %vm321, %v365, %v364
          %v368 = vmul.f32 %v359, %v366
          %v369 = vadd.f32 %v347, %v368
          %370 = vrot.lane.b32.xlu0 %v295, 48
          %v371 = vpop.permute.xlu0 %370
          %372 = vrot.lane.b32.xlu0 %v296, 48
          %v373 = vpop.permute.xlu0 %372
          %374 = vrot.lane.b32.xlu0 %v297, 48
          %v375 = vpop.permute.xlu0 %374
          %vm376 = vcmp.lt.s32.totalorder %v308, 48
          %v377 = vsel %vm376, %v373, %v375
          %v378 = vsel %vm376, %v371, %v373
          %v379 = vsel %vm376, %v375, %v371
          %s380 = scalar_lea.vmem [#allocation3], 3
          %v381 = vld [vmem:[%s380] ss:$8 sm:$0x7]
          %v385 = vrot.slane %v378, 7
          %v386 = vrot.slane %v377, 6
          %v387 = vsel %vm319, %v379, %v385
          %v388 = vsel %vm321, %v387, %v386
          %v390 = vmul.f32 %v381, %v388
          %v391 = vadd.f32 %v369, %v390
          %392 = vrot.lane.b32.xlu0 %v295, 47
          %v393 = vpop.permute.xlu0 %392
          %394 = vrot.lane.b32.xlu0 %v296, 47
          %v395 = vpop.permute.xlu0 %394
          %396 = vrot.lane.b32.xlu0 %v297, 47
          %v397 = vpop.permute.xlu0 %396
          %vm398 = vcmp.lt.s32.totalorder %v308, 47
          %v399 = vsel %vm398, %v395, %v397
          %v400 = vsel %vm398, %v393, %v395
          %v401 = vsel %vm398, %v397, %v393
          %s402 = scalar_lea.vmem [#allocation3], 4
          %v403 = vld [vmem:[%s402] ss:$8 sm:$0x7]
          %v407 = vrot.slane %v400, 7
          %v408 = vrot.slane %v399, 6
          %v409 = vsel %vm319, %v401, %v407
          %v410 = vsel %vm321, %v409, %v408
          %v412 = vmul.f32 %v403, %v410
          %v413 = vadd.f32 %v391, %v412
          %414 = vrot.lane.b32.xlu0 %v295, 46
          %v415 = vpop.permute.xlu0 %414
          %416 = vrot.lane.b32.xlu0 %v296, 46
          %v417 = vpop.permute.xlu0 %416
          %418 = vrot.lane.b32.xlu0 %v297, 46
          %v419 = vpop.permute.xlu0 %418
          %vm420 = vcmp.lt.s32.totalorder %v308, 46
          %v421 = vsel %vm420, %v417, %v419
          %v422 = vsel %vm420, %v415, %v417
          %v423 = vsel %vm420, %v419, %v415
          %s424 = scalar_lea.vmem [#allocation3], 5
          %v425 = vld [vmem:[%s424] ss:$8 sm:$0x7]
          %v429 = vrot.slane %v422, 7
          %v430 = vrot.slane %v421, 6
          %v431 = vsel %vm319, %v423, %v429
          %v432 = vsel %vm321, %v431, %v430
          %v434 = vmul.f32 %v425, %v432
          %v435 = vadd.f32 %v413, %v434
          %436 = vrot.lane.b32.xlu0 %v295, 45
          %v437 = vpop.permute.xlu0 %436
          %438 = vrot.lane.b32.xlu0 %v296, 45
          %v439 = vpop.permute.xlu0 %438
          %440 = vrot.lane.b32.xlu0 %v297, 45
          %v441 = vpop.permute.xlu0 %440
          %vm442 = vcmp.lt.s32.totalorder %v308, 45
          %v443 = vsel %vm442, %v439, %v441
          %v444 = vsel %vm442, %v437, %v439
          %v445 = vsel %vm442, %v441, %v437
          %s446 = scalar_lea.vmem [#allocation3], 6
          %v447 = vld [vmem:[%s446] ss:$8 sm:$0x7]
          %v451 = vrot.slane %v444, 7
          %v452 = vrot.slane %v443, 6
          %v453 = vsel %vm319, %v445, %v451
          %v454 = vsel %vm321, %v453, %v452
          %v456 = vmul.f32 %v447, %v454
          %v457 = vadd.f32 %v435, %v456
          %458 = vrot.lane.b32.xlu0 %v295, 35
          %v459 = vpop.permute.xlu0 %458
          %460 = vrot.lane.b32.xlu0 %v296, 35
          %v461 = vpop.permute.xlu0 %460
          %462 = vrot.lane.b32.xlu0 %v297, 35
          %v463 = vpop.permute.xlu0 %462
          %vm464 = vcmp.lt.s32.totalorder %v308, 35
          %v465 = vsel %vm464, %v461, %v463
          %v466 = vsel %vm464, %v459, %v461
          %v467 = vsel %vm464, %v463, %v459
          %s468 = scalar_lea.vmem [#allocation3], 7
          %v469 = vld [vmem:[%s468] ss:$8 sm:$0x7]
          %v473 = vrot.slane %v466, 7
          %v474 = vrot.slane %v465, 6
          %v475 = vsel %vm319, %v467, %v473
          %v476 = vsel %vm321, %v475, %v474
          %v478 = vmul.f32 %v469, %v476
          %v479 = vadd.f32 %v457, %v478
          %480 = vrot.lane.b32.xlu0 %v295, 34
          %v481 = vpop.permute.xlu0 %480
          %482 = vrot.lane.b32.xlu0 %v296, 34
          %v483 = vpop.permute.xlu0 %482
          %484 = vrot.lane.b32.xlu0 %v297, 34
          %v485 = vpop.permute.xlu0 %484
          %vm486 = vcmp.lt.s32.totalorder %v308, 34
          %v487 = vsel %vm486, %v483, %v485
          %v488 = vsel %vm486, %v481, %v483
          %v489 = vsel %vm486, %v485, %v481
          %s490 = scalar_lea.vmem [#allocation3], 24
          %v491 = vld [vmem:[%s490] ss:$8 sm:$0x7]
          %v495 = vrot.slane %v488, 7
          %v496 = vrot.slane %v487, 6
          %v497 = vsel %vm319, %v489, %v495
          %v498 = vsel %vm321, %v497, %v496
          %v500 = vmul.f32 %v491, %v498
          %v501 = vadd.f32 %v479, %v500
          %502 = vrot.lane.b32.xlu0 %v295, 33
          %v503 = vpop.permute.xlu0 %502
          %504 = vrot.lane.b32.xlu0 %v296, 33
          %v505 = vpop.permute.xlu0 %504
          %506 = vrot.lane.b32.xlu0 %v297, 33
          %v507 = vpop.permute.xlu0 %506
          %vm508 = vcmp.lt.s32.totalorder %v308, 33
          %v509 = vsel %vm508, %v505, %v507
          %v510 = vsel %vm508, %v503, %v505
          %v511 = vsel %vm508, %v507, %v503
          %s512 = scalar_lea.vmem [#allocation3], 25
          %v513 = vld [vmem:[%s512] ss:$8 sm:$0x7]
          %v517 = vrot.slane %v510, 7
          %v518 = vrot.slane %v509, 6
          %v519 = vsel %vm319, %v511, %v517
          %v520 = vsel %vm321, %v519, %v518
          %v522 = vmul.f32 %v513, %v520
          %v523 = vadd.f32 %v501, %v522
          %524 = vrot.lane.b32.xlu0 %v295, 32
          %v525 = vpop.permute.xlu0 %524
          %526 = vrot.lane.b32.xlu0 %v296, 32
          %v527 = vpop.permute.xlu0 %526
          %528 = vrot.lane.b32.xlu0 %v297, 32
          %v529 = vpop.permute.xlu0 %528
          %vm530 = vcmp.lt.s32.totalorder %v308, 32
          %v531 = vsel %vm530, %v527, %v529
          %v532 = vsel %vm530, %v525, %v527
          %v533 = vsel %vm530, %v529, %v525
          %s534 = scalar_lea.vmem [#allocation3], 26
          %v535 = vld [vmem:[%s534] ss:$8 sm:$0x7]
          %v539 = vrot.slane %v532, 7
          %v540 = vrot.slane %v531, 6
          %v541 = vsel %vm319, %v533, %v539
          %v542 = vsel %vm321, %v541, %v540
          %v544 = vmul.f32 %v535, %v542
          %v545 = vadd.f32 %v523, %v544
          %546 = vrot.lane.b32.xlu0 %v295, 31
          %v547 = vpop.permute.xlu0 %546
          %548 = vrot.lane.b32.xlu0 %v296, 31
          %v549 = vpop.permute.xlu0 %548
          %550 = vrot.lane.b32.xlu0 %v297, 31
          %v551 = vpop.permute.xlu0 %550
          %vm552 = vcmp.lt.s32.totalorder %v308, 31
          %v553 = vsel %vm552, %v549, %v551
          %v554 = vsel %vm552, %v547, %v549
          %v555 = vsel %vm552, %v551, %v547
          %s556 = scalar_lea.vmem [#allocation3], 27
          %v557 = vld [vmem:[%s556] ss:$8 sm:$0x7]
          %v561 = vrot.slane %v554, 7
          %v562 = vrot.slane %v553, 6
          %v563 = vsel %vm319, %v555, %v561
          %v564 = vsel %vm321, %v563, %v562
          %v566 = vmul.f32 %v557, %v564
          %v567 = vadd.f32 %v545, %v566
          %568 = vrot.lane.b32.xlu0 %v295, 30
          %v569 = vpop.permute.xlu0 %568
          %570 = vrot.lane.b32.xlu0 %v296, 30
          %v571 = vpop.permute.xlu0 %570
          %572 = vrot.lane.b32.xlu0 %v297, 30
          %v573 = vpop.permute.xlu0 %572
          %vm574 = vcmp.lt.s32.totalorder %v308, 30
          %v575 = vsel %vm574, %v571, %v573
          %v576 = vsel %vm574, %v569, %v571
          %v577 = vsel %vm574, %v573, %v569
          %s578 = scalar_lea.vmem [#allocation3], 28
          %v579 = vld [vmem:[%s578] ss:$8 sm:$0x7]
          %v583 = vrot.slane %v576, 7
          %v584 = vrot.slane %v575, 6
          %v585 = vsel %vm319, %v577, %v583
          %v586 = vsel %vm321, %v585, %v584
          %v588 = vmul.f32 %v579, %v586
          %v589 = vadd.f32 %v567, %v588
          %590 = vrot.lane.b32.xlu0 %v295, 29
          %v591 = vpop.permute.xlu0 %590
          %592 = vrot.lane.b32.xlu0 %v296, 29
          %v593 = vpop.permute.xlu0 %592
          %594 = vrot.lane.b32.xlu0 %v297, 29
          %v595 = vpop.permute.xlu0 %594
          %vm596 = vcmp.lt.s32.totalorder %v308, 29
          %v597 = vsel %vm596, %v593, %v595
          %v598 = vsel %vm596, %v591, %v593
          %v599 = vsel %vm596, %v595, %v591
          %s600 = scalar_lea.vmem [#allocation3], 29
          %v601 = vld [vmem:[%s600] ss:$8 sm:$0x7]
          %v605 = vrot.slane %v598, 7
          %v606 = vrot.slane %v597, 6
          %v607 = vsel %vm319, %v599, %v605
          %v608 = vsel %vm321, %v607, %v606
          %v610 = vmul.f32 %v601, %v608
          %v611 = vadd.f32 %v589, %v610
          %612 = vrot.lane.b32.xlu0 %v295, 19
          %v613 = vpop.permute.xlu0 %612
          %614 = vrot.lane.b32.xlu0 %v296, 19
          %v615 = vpop.permute.xlu0 %614
          %616 = vrot.lane.b32.xlu0 %v297, 19
          %v617 = vpop.permute.xlu0 %616
          %vm618 = vcmp.lt.s32.totalorder %v308, 19
          %v619 = vsel %vm618, %v615, %v617
          %v620 = vsel %vm618, %v613, %v615
          %v621 = vsel %vm618, %v617, %v613
          %s622 = scalar_lea.vmem [#allocation3], 30
          %v623 = vld [vmem:[%s622] ss:$8 sm:$0x7]
          %v627 = vrot.slane %v620, 7
          %v628 = vrot.slane %v619, 6
          %v629 = vsel %vm319, %v621, %v627
          %v630 = vsel %vm321, %v629, %v628
          %v632 = vmul.f32 %v623, %v630
          %v633 = vadd.f32 %v611, %v632
          %634 = vrot.lane.b32.xlu0 %v295, 18
          %v635 = vpop.permute.xlu0 %634
          %636 = vrot.lane.b32.xlu0 %v296, 18
          %v637 = vpop.permute.xlu0 %636
          %638 = vrot.lane.b32.xlu0 %v297, 18
          %v639 = vpop.permute.xlu0 %638
          %vm640 = vcmp.lt.s32.totalorder %v308, 18
          %v641 = vsel %vm640, %v637, %v639
          %v642 = vsel %vm640, %v635, %v637
          %v643 = vsel %vm640, %v639, %v635
          %s644 = scalar_lea.vmem [#allocation3], 31
          %v645 = vld [vmem:[%s644] ss:$8 sm:$0x7]
          %v649 = vrot.slane %v642, 7
          %v650 = vrot.slane %v641, 6
          %v651 = vsel %vm319, %v643, %v649
          %v652 = vsel %vm321, %v651, %v650
          %v654 = vmul.f32 %v645, %v652
          %v655 = vadd.f32 %v633, %v654
          %656 = vrot.lane.b32.xlu0 %v295, 17
          %v657 = vpop.permute.xlu0 %656
          %658 = vrot.lane.b32.xlu0 %v296, 17
          %v659 = vpop.permute.xlu0 %658
          %660 = vrot.lane.b32.xlu0 %v297, 17
          %v661 = vpop.permute.xlu0 %660
          %vm662 = vcmp.lt.s32.totalorder %v308, 17
          %v663 = vsel %vm662, %v659, %v661
          %v664 = vsel %vm662, %v657, %v659
          %v665 = vsel %vm662, %v661, %v657
          %s666 = scalar_lea.vmem [#allocation3], 48
          %v667 = vld [vmem:[%s666] ss:$8 sm:$0x7]
          %v671 = vrot.slane %v664, 7
          %v672 = vrot.slane %v663, 6
          %v673 = vsel %vm319, %v665, %v671
          %v674 = vsel %vm321, %v673, %v672
          %v676 = vmul.f32 %v667, %v674
          %v677 = vadd.f32 %v655, %v676
          %678 = vrot.lane.b32.xlu0 %v295, 16
          %v679 = vpop.permute.xlu0 %678
          %680 = vrot.lane.b32.xlu0 %v296, 16
          %v681 = vpop.permute.xlu0 %680
          %682 = vrot.lane.b32.xlu0 %v297, 16
          %v683 = vpop.permute.xlu0 %682
          %vm684 = vcmp.lt.s32.totalorder %v308, 16
          %v685 = vsel %vm684, %v681, %v683
          %v686 = vsel %vm684, %v679, %v681
          %v687 = vsel %vm684, %v683, %v679
          %s688 = scalar_lea.vmem [#allocation3], 49
          %v689 = vld [vmem:[%s688] ss:$8 sm:$0x7]
          %v693 = vrot.slane %v686, 7
          %v694 = vrot.slane %v685, 6
          %v695 = vsel %vm319, %v687, %v693
          %v696 = vsel %vm321, %v695, %v694
          %v698 = vmul.f32 %v689, %v696
          %v699 = vadd.f32 %v677, %v698
          %700 = vrot.lane.b32.xlu0 %v295, 15
          %v701 = vpop.permute.xlu0 %700
          %702 = vrot.lane.b32.xlu0 %v296, 15
          %v703 = vpop.permute.xlu0 %702
          %704 = vrot.lane.b32.xlu0 %v297, 15
          %v705 = vpop.permute.xlu0 %704
          %vm706 = vcmp.lt.s32.totalorder %v308, 15
          %v707 = vsel %vm706, %v703, %v705
          %v708 = vsel %vm706, %v701, %v703
          %v709 = vsel %vm706, %v705, %v701
          %s710 = scalar_lea.vmem [#allocation3], 50
          %v711 = vld [vmem:[%s710] ss:$8 sm:$0x7]
          %v715 = vrot.slane %v708, 7
          %v716 = vrot.slane %v707, 6
          %v717 = vsel %vm319, %v709, %v715
          %v718 = vsel %vm321, %v717, %v716
          %v720 = vmul.f32 %v711, %v718
          %v721 = vadd.f32 %v699, %v720
          %722 = vrot.lane.b32.xlu0 %v295, 14
          %v723 = vpop.permute.xlu0 %722
          %724 = vrot.lane.b32.xlu0 %v296, 14
          %v725 = vpop.permute.xlu0 %724
          %726 = vrot.lane.b32.xlu0 %v297, 14
          %v727 = vpop.permute.xlu0 %726
          %vm728 = vcmp.lt.s32.totalorder %v308, 14
          %v729 = vsel %vm728, %v725, %v727
          %v730 = vsel %vm728, %v723, %v725
          %v731 = vsel %vm728, %v727, %v723
          %s732 = scalar_lea.vmem [#allocation3], 51
          %v733 = vld [vmem:[%s732] ss:$8 sm:$0x7]
          %v737 = vrot.slane %v730, 7
          %v738 = vrot.slane %v729, 6
          %v739 = vsel %vm319, %v731, %v737
          %v740 = vsel %vm321, %v739, %v738
          %v742 = vmul.f32 %v733, %v740
          %v743 = vadd.f32 %v721, %v742
          %744 = vrot.lane.b32.xlu0 %v295, 13
          %v745 = vpop.permute.xlu0 %744
          %746 = vrot.lane.b32.xlu0 %v296, 13
          %v747 = vpop.permute.xlu0 %746
          %748 = vrot.lane.b32.xlu0 %v297, 13
          %v749 = vpop.permute.xlu0 %748
          %vm750 = vcmp.lt.s32.totalorder %v308, 13
          %v751 = vsel %vm750, %v747, %v749
          %v752 = vsel %vm750, %v745, %v747
          %v753 = vsel %vm750, %v749, %v745
          %s754 = scalar_lea.vmem [#allocation3], 52
          %v755 = vld [vmem:[%s754] ss:$8 sm:$0x7]
          %v759 = vrot.slane %v752, 7
          %v760 = vrot.slane %v751, 6
          %v761 = vsel %vm319, %v753, %v759
          %v762 = vsel %vm321, %v761, %v760
          %v764 = vmul.f32 %v755, %v762
          %v765 = vadd.f32 %v743, %v764
          %766 = vrot.lane.b32.xlu0 %v295, 3
          %v767 = vpop.permute.xlu0 %766
          %768 = vrot.lane.b32.xlu0 %v296, 3
          %v769 = vpop.permute.xlu0 %768
          %770 = vrot.lane.b32.xlu0 %v297, 3
          %v771 = vpop.permute.xlu0 %770
          %vm772 = vcmp.lt.s32.totalorder %v308, 3
          %v773 = vsel %vm772, %v769, %v771
          %v774 = vsel %vm772, %v767, %v769
          %v775 = vsel %vm772, %v771, %v767
          %s776 = scalar_lea.vmem [#allocation3], 53
          %v777 = vld [vmem:[%s776] ss:$8 sm:$0x7]
          %v781 = vrot.slane %v774, 7
          %v782 = vrot.slane %v773, 6
          %v783 = vsel %vm319, %v775, %v781
          %v784 = vsel %vm321, %v783, %v782
          %v786 = vmul.f32 %v777, %v784
          %v787 = vadd.f32 %v765, %v786
          %788 = vrot.lane.b32.xlu0 %v295, 2
          %v789 = vpop.permute.xlu0 %788
          %790 = vrot.lane.b32.xlu0 %v296, 2
          %v791 = vpop.permute.xlu0 %790
          %792 = vrot.lane.b32.xlu0 %v297, 2
          %v793 = vpop.permute.xlu0 %792
          %vm794 = vcmp.lt.s32.totalorder %v308, 2
          %v795 = vsel %vm794, %v791, %v793
          %v796 = vsel %vm794, %v789, %v791
          %v797 = vsel %vm794, %v793, %v789
          %s798 = scalar_lea.vmem [#allocation3], 54
          %v799 = vld [vmem:[%s798] ss:$8 sm:$0x7]
          %v803 = vrot.slane %v796, 7
          %v804 = vrot.slane %v795, 6
          %v805 = vsel %vm319, %v797, %v803
          %v806 = vsel %vm321, %v805, %v804
          %v808 = vmul.f32 %v799, %v806
          %v809 = vadd.f32 %v787, %v808
          %810 = vrot.lane.b32.xlu0 %v295, 1
          %v811 = vpop.permute.xlu0 %810
          %812 = vrot.lane.b32.xlu0 %v296, 1
          %v813 = vpop.permute.xlu0 %812
          %814 = vrot.lane.b32.xlu0 %v297, 1
          %v815 = vpop.permute.xlu0 %814
          %vm816 = vcmp.lt.s32.totalorder %v308, 1
          %v817 = vsel %vm816, %v813, %v815
          %v818 = vsel %vm816, %v811, %v813
          %v819 = vsel %vm816, %v815, %v811
          %s820 = scalar_lea.vmem [#allocation3], 55
          %v821 = vld [vmem:[%s820] ss:$8 sm:$0x7]
          %v825 = vrot.slane %v818, 7
          %v826 = vrot.slane %v817, 6
          %v827 = vsel %vm319, %v819, %v825
          %v828 = vsel %vm321, %v827, %v826
          %v830 = vmul.f32 %v821, %v828
          %v831 = vadd.f32 %v809, %v830
          %s832 = scalar_lea.vmem [#allocation3], 72
          %v833 = vld [vmem:[%s832] ss:$8 sm:$0x7]
          %v834 = vmul.f32 %v833, %v291
          %v835 = vadd.f32 %v831, %v834
          %836 = vrot.lane.b32.xlu0 %v295, 127
          %v837 = vpop.permute.xlu0 %836
          %838 = vrot.lane.b32.xlu0 %v296, 127
          %v839 = vpop.permute.xlu0 %838
          %840 = vrot.lane.b32.xlu0 %v297, 127
          %v841 = vpop.permute.xlu0 %840
          %vm842 = vcmp.lt.s32.totalorder %v308, 127
          %v843 = vsel %vm842, %v839, %v841
          %v844 = vsel %vm842, %v837, %v839
          %v845 = vsel %vm842, %v841, %v837
          %s846 = scalar_lea.vmem [#allocation3], 73
          %v847 = vld [vmem:[%s846] ss:$8 sm:$0x7]
          %v851 = vrot.slane %v843, 7
          %v852 = vrot.slane %v845, 6
          %v853 = vsel %vm319, %v844, %v851
          %v854 = vsel %vm321, %v853, %v852
          %v856 = vmul.f32 %v847, %v854
          %v857 = vadd.f32 %v835, %v856
          %858 = vrot.lane.b32.xlu0 %v295, 126
          %v859 = vpop.permute.xlu0 %858
          %860 = vrot.lane.b32.xlu0 %v296, 126
          %v861 = vpop.permute.xlu0 %860
          %862 = vrot.lane.b32.xlu0 %v297, 126
          %v863 = vpop.permute.xlu0 %862
          %vm864 = vcmp.lt.s32.totalorder %v308, 126
          %v865 = vsel %vm864, %v861, %v863
          %v866 = vsel %vm864, %v859, %v861
          %v867 = vsel %vm864, %v863, %v859
          %s868 = scalar_lea.vmem [#allocation3], 74
          %v869 = vld [vmem:[%s868] ss:$8 sm:$0x7]
          %v873 = vrot.slane %v865, 7
          %v874 = vrot.slane %v867, 6
          %v875 = vsel %vm319, %v866, %v873
          %v876 = vsel %vm321, %v875, %v874
          %v878 = vmul.f32 %v869, %v876
          %v879 = vadd.f32 %v857, %v878
          %880 = vrot.lane.b32.xlu0 %v295, 125
          %v881 = vpop.permute.xlu0 %880
          %882 = vrot.lane.b32.xlu0 %v296, 125
          %v883 = vpop.permute.xlu0 %882
          %884 = vrot.lane.b32.xlu0 %v297, 125
          %v885 = vpop.permute.xlu0 %884
          %vm886 = vcmp.lt.s32.totalorder %v308, 125
          %v887 = vsel %vm886, %v883, %v885
          %v888 = vsel %vm886, %v881, %v883
          %v889 = vsel %vm886, %v885, %v881
          %s890 = scalar_lea.vmem [#allocation3], 75
          %v891 = vld [vmem:[%s890] ss:$8 sm:$0x7]
          %v895 = vrot.slane %v887, 7
          %v896 = vrot.slane %v889, 6
          %v897 = vsel %vm319, %v888, %v895
          %v898 = vsel %vm321, %v897, %v896
          %v900 = vmul.f32 %v891, %v898
          %v901 = vadd.f32 %v879, %v900
          %902 = vrot.lane.b32.xlu0 %v295, 115
          %v903 = vpop.permute.xlu0 %902
          %904 = vrot.lane.b32.xlu0 %v296, 115
          %v905 = vpop.permute.xlu0 %904
          %906 = vrot.lane.b32.xlu0 %v297, 115
          %v907 = vpop.permute.xlu0 %906
          %vm908 = vcmp.lt.s32.totalorder %v308, 115
          %v909 = vsel %vm908, %v905, %v907
          %v910 = vsel %vm908, %v903, %v905
          %v911 = vsel %vm908, %v907, %v903
          %s912 = scalar_lea.vmem [#allocation3], 76
          %v913 = vld [vmem:[%s912] ss:$8 sm:$0x7]
          %v917 = vrot.slane %v909, 7
          %v918 = vrot.slane %v911, 6
          %v919 = vsel %vm319, %v910, %v917
          %v920 = vsel %vm321, %v919, %v918
          %v922 = vmul.f32 %v913, %v920
          %v923 = vadd.f32 %v901, %v922
          %924 = vrot.lane.b32.xlu0 %v295, 114
          %v925 = vpop.permute.xlu0 %924
          %926 = vrot.lane.b32.xlu0 %v296, 114
          %v927 = vpop.permute.xlu0 %926
          %928 = vrot.lane.b32.xlu0 %v297, 114
          %v929 = vpop.permute.xlu0 %928
          %vm930 = vcmp.lt.s32.totalorder %v308, 114
          %v931 = vsel %vm930, %v927, %v929
          %v932 = vsel %vm930, %v925, %v927
          %v933 = vsel %vm930, %v929, %v925
          %s934 = scalar_lea.vmem [#allocation3], 77
          %v935 = vld [vmem:[%s934] ss:$8 sm:$0x7]
          %v939 = vrot.slane %v931, 7
          %v940 = vrot.slane %v933, 6
          %v941 = vsel %vm319, %v932, %v939
          %v942 = vsel %vm321, %v941, %v940
          %v944 = vmul.f32 %v935, %v942
          %v945 = vadd.f32 %v923, %v944
          %946 = vrot.lane.b32.xlu0 %v295, 113
          %v947 = vpop.permute.xlu0 %946
          %948 = vrot.lane.b32.xlu0 %v296, 113
          %v949 = vpop.permute.xlu0 %948
          %950 = vrot.lane.b32.xlu0 %v297, 113
          %v951 = vpop.permute.xlu0 %950
          %vm952 = vcmp.lt.s32.totalorder %v308, 113
          %v953 = vsel %vm952, %v949, %v951
          %v954 = vsel %vm952, %v947, %v949
          %v955 = vsel %vm952, %v951, %v947
          %s956 = scalar_lea.vmem [#allocation3], 78
          %v957 = vld [vmem:[%s956] ss:$8 sm:$0x7]
          %v961 = vrot.slane %v953, 7
          %v962 = vrot.slane %v955, 6
          %v963 = vsel %vm319, %v954, %v961
          %v964 = vsel %vm321, %v963, %v962
          %v966 = vmul.f32 %v957, %v964
          %v967 = vadd.f32 %v945, %v966
          %968 = vrot.lane.b32.xlu0 %v295, 112
          %v969 = vpop.permute.xlu0 %968
          %970 = vrot.lane.b32.xlu0 %v296, 112
          %v971 = vpop.permute.xlu0 %970
          %972 = vrot.lane.b32.xlu0 %v297, 112
          %v973 = vpop.permute.xlu0 %972
          %vm974 = vcmp.lt.s32.totalorder %v308, 112
          %v975 = vsel %vm974, %v971, %v973
          %v976 = vsel %vm974, %v969, %v971
          %v977 = vsel %vm974, %v973, %v969
          %s978 = scalar_lea.vmem [#allocation3], 79
          %v979 = vld [vmem:[%s978] ss:$8 sm:$0x7]
          %v983 = vrot.slane %v975, 7
          %v984 = vrot.slane %v977, 6
          %v985 = vsel %vm319, %v976, %v983
          %v986 = vsel %vm321, %v985, %v984
          %v988 = vmul.f32 %v979, %v986
          %v989 = vadd.f32 %v967, %v988
          %990 = vrot.lane.b32.xlu0 %v295, 111
          %v991 = vpop.permute.xlu0 %990
          %992 = vrot.lane.b32.xlu0 %v296, 111
          %v993 = vpop.permute.xlu0 %992
          %994 = vrot.lane.b32.xlu0 %v297, 111
          %v995 = vpop.permute.xlu0 %994
          %vm996 = vcmp.lt.s32.totalorder %v308, 111
          %v997 = vsel %vm996, %v993, %v995
          %v998 = vsel %vm996, %v991, %v993
          %v999 = vsel %vm996, %v995, %v991
          %s1000 = scalar_lea.vmem [#allocation3], 96
          %v1001 = vld [vmem:[%s1000] ss:$8 sm:$0x7]
          %v1005 = vrot.slane %v997, 7
          %v1006 = vrot.slane %v999, 6
          %v1007 = vsel %vm319, %v998, %v1005
          %v1008 = vsel %vm321, %v1007, %v1006
          %v1010 = vmul.f32 %v1001, %v1008
          %v1011 = vadd.f32 %v989, %v1010
          %1012 = vrot.lane.b32.xlu0 %v295, 110
          %v1013 = vpop.permute.xlu0 %1012
          %1014 = vrot.lane.b32.xlu0 %v296, 110
          %v1015 = vpop.permute.xlu0 %1014
          %1016 = vrot.lane.b32.xlu0 %v297, 110
          %v1017 = vpop.permute.xlu0 %1016
          %vm1018 = vcmp.lt.s32.totalorder %v308, 110
          %v1019 = vsel %vm1018, %v1015, %v1017
          %v1020 = vsel %vm1018, %v1013, %v1015
          %v1021 = vsel %vm1018, %v1017, %v1013
          %s1022 = scalar_lea.vmem [#allocation3], 97
          %v1023 = vld [vmem:[%s1022] ss:$8 sm:$0x7]
          %v1027 = vrot.slane %v1019, 7
          %v1028 = vrot.slane %v1021, 6
          %v1029 = vsel %vm319, %v1020, %v1027
          %v1030 = vsel %vm321, %v1029, %v1028
          %v1032 = vmul.f32 %v1023, %v1030
          %v1033 = vadd.f32 %v1011, %v1032
          %1034 = vrot.lane.b32.xlu0 %v295, 109
          %v1035 = vpop.permute.xlu0 %1034
          %1036 = vrot.lane.b32.xlu0 %v296, 109
          %v1037 = vpop.permute.xlu0 %1036
          %1038 = vrot.lane.b32.xlu0 %v297, 109
          %v1039 = vpop.permute.xlu0 %1038
          %vm1040 = vcmp.lt.s32.totalorder %v308, 109
          %v1041 = vsel %vm1040, %v1037, %v1039
          %v1042 = vsel %vm1040, %v1035, %v1037
          %v1043 = vsel %vm1040, %v1039, %v1035
          %s1044 = scalar_lea.vmem [#allocation3], 98
          %v1045 = vld [vmem:[%s1044] ss:$8 sm:$0x7]
          %v1049 = vrot.slane %v1041, 7
          %v1050 = vrot.slane %v1043, 6
          %v1051 = vsel %vm319, %v1042, %v1049
          %v1052 = vsel %vm321, %v1051, %v1050
          %v1054 = vmul.f32 %v1045, %v1052
          %v1055 = vadd.f32 %v1033, %v1054
          %1056 = vrot.lane.b32.xlu0 %v295, 99
          %v1057 = vpop.permute.xlu0 %1056
          %1058 = vrot.lane.b32.xlu0 %v296, 99
          %v1059 = vpop.permute.xlu0 %1058
          %1060 = vrot.lane.b32.xlu0 %v297, 99
          %v1061 = vpop.permute.xlu0 %1060
          %vm1062 = vcmp.lt.s32.totalorder %v308, 99
          %v1063 = vsel %vm1062, %v1059, %v1061
          %v1064 = vsel %vm1062, %v1057, %v1059
          %v1065 = vsel %vm1062, %v1061, %v1057
          %s1066 = scalar_lea.vmem [#allocation3], 99
          %v1067 = vld [vmem:[%s1066] ss:$8 sm:$0x7]
          %v1071 = vrot.slane %v1063, 7
          %v1072 = vrot.slane %v1065, 6
          %v1073 = vsel %vm319, %v1064, %v1071
          %v1074 = vsel %vm321, %v1073, %v1072
          %v1076 = vmul.f32 %v1067, %v1074
          %v1077 = vadd.f32 %v1055, %v1076
          %1078 = vrot.lane.b32.xlu0 %v295, 98
          %v1079 = vpop.permute.xlu0 %1078
          %1080 = vrot.lane.b32.xlu0 %v296, 98
          %v1081 = vpop.permute.xlu0 %1080
          %1082 = vrot.lane.b32.xlu0 %v297, 98
          %v1083 = vpop.permute.xlu0 %1082
          %vm1084 = vcmp.lt.s32.totalorder %v308, 98
          %v1085 = vsel %vm1084, %v1081, %v1083
          %v1086 = vsel %vm1084, %v1079, %v1081
          %v1087 = vsel %vm1084, %v1083, %v1079
          %s1088 = scalar_lea.vmem [#allocation3], 100
          %v1089 = vld [vmem:[%s1088] ss:$8 sm:$0x7]
          %v1093 = vrot.slane %v1085, 7
          %v1094 = vrot.slane %v1087, 6
          %v1095 = vsel %vm319, %v1086, %v1093
          %v1096 = vsel %vm321, %v1095, %v1094
          %v1098 = vmul.f32 %v1089, %v1096
          %v1099 = vadd.f32 %v1077, %v1098
          %1100 = vrot.lane.b32.xlu0 %v295, 97
          %v1101 = vpop.permute.xlu0 %1100
          %1102 = vrot.lane.b32.xlu0 %v296, 97
          %v1103 = vpop.permute.xlu0 %1102
          %1104 = vrot.lane.b32.xlu0 %v297, 97
          %v1105 = vpop.permute.xlu0 %1104
          %vm1106 = vcmp.lt.s32.totalorder %v308, 97
          %v1107 = vsel %vm1106, %v1103, %v1105
          %v1108 = vsel %vm1106, %v1101, %v1103
          %v1109 = vsel %vm1106, %v1105, %v1101
          %s1110 = scalar_lea.vmem [#allocation3], 101
          %v1111 = vld [vmem:[%s1110] ss:$8 sm:$0x7]
          %v1115 = vrot.slane %v1107, 7
          %v1116 = vrot.slane %v1109, 6
          %v1117 = vsel %vm319, %v1108, %v1115
          %v1118 = vsel %vm321, %v1117, %v1116
          %v1120 = vmul.f32 %v1111, %v1118
          %v1121 = vadd.f32 %v1099, %v1120
          %1122 = vrot.lane.b32.xlu0 %v295, 96
          %v1123 = vpop.permute.xlu0 %1122
          %1124 = vrot.lane.b32.xlu0 %v296, 96
          %v1125 = vpop.permute.xlu0 %1124
          %1126 = vrot.lane.b32.xlu0 %v297, 96
          %v1127 = vpop.permute.xlu0 %1126
          %vm1128 = vcmp.lt.s32.totalorder %v308, 96
          %v1129 = vsel %vm1128, %v1125, %v1127
          %v1130 = vsel %vm1128, %v1123, %v1125
          %v1131 = vsel %vm1128, %v1127, %v1123
          %s1132 = scalar_lea.vmem [#allocation3], 102
          %v1133 = vld [vmem:[%s1132] ss:$8 sm:$0x7]
          %v1137 = vrot.slane %v1129, 7
          %v1138 = vrot.slane %v1131, 6
          %v1139 = vsel %vm319, %v1130, %v1137
          %v1140 = vsel %vm321, %v1139, %v1138
          %v1142 = vmul.f32 %v1133, %v1140
          %v1143 = vadd.f32 %v1121, %v1142
          %1144 = vrot.lane.b32.xlu0 %v295, 95
          %v1145 = vpop.permute.xlu0 %1144
          %1146 = vrot.lane.b32.xlu0 %v296, 95
          %v1147 = vpop.permute.xlu0 %1146
          %1148 = vrot.lane.b32.xlu0 %v297, 95
          %v1149 = vpop.permute.xlu0 %1148
          %vm1150 = vcmp.lt.s32.totalorder %v308, 95
          %v1151 = vsel %vm1150, %v1147, %v1149
          %v1152 = vsel %vm1150, %v1145, %v1147
          %v1153 = vsel %vm1150, %v1149, %v1145
          %s1154 = scalar_lea.vmem [#allocation3], 103
          %v1155 = vld [vmem:[%s1154] ss:$8 sm:$0x7]
          %v1159 = vrot.slane %v1151, 7
          %v1160 = vrot.slane %v1153, 6
          %v1161 = vsel %vm319, %v1152, %v1159
          %v1162 = vsel %vm321, %v1161, %v1160
          %v1164 = vmul.f32 %v1155, %v1162
          %v1165 = vadd.f32 %v1143, %v1164
          %1166 = vrot.lane.b32.xlu0 %v295, 94
          %v1167 = vpop.permute.xlu0 %1166
          %1168 = vrot.lane.b32.xlu0 %v296, 94
          %v1169 = vpop.permute.xlu0 %1168
          %1170 = vrot.lane.b32.xlu0 %v297, 94
          %v1171 = vpop.permute.xlu0 %1170
          %vm1172 = vcmp.lt.s32.totalorder %v308, 94
          %v1173 = vsel %vm1172, %v1169, %v1171
          %v1174 = vsel %vm1172, %v1167, %v1169
          %v1175 = vsel %vm1172, %v1171, %v1167
          %s1176 = scalar_lea.vmem [#allocation3], 120
          %v1177 = vld [vmem:[%s1176] ss:$8 sm:$0x7]
          %v1181 = vrot.slane %v1173, 7
          %v1182 = vrot.slane %v1175, 6
          %v1183 = vsel %vm319, %v1174, %v1181
          %v1184 = vsel %vm321, %v1183, %v1182
          %v1186 = vmul.f32 %v1177, %v1184
          %v1187 = vadd.f32 %v1165, %v1186
          %1188 = vrot.lane.b32.xlu0 %v295, 93
          %v1189 = vpop.permute.xlu0 %1188
          %1190 = vrot.lane.b32.xlu0 %v296, 93
          %v1191 = vpop.permute.xlu0 %1190
          %1192 = vrot.lane.b32.xlu0 %v297, 93
          %v1193 = vpop.permute.xlu0 %1192
          %vm1194 = vcmp.lt.s32.totalorder %v308, 93
          %v1195 = vsel %vm1194, %v1191, %v1193
          %v1196 = vsel %vm1194, %v1189, %v1191
          %v1197 = vsel %vm1194, %v1193, %v1189
          %s1198 = scalar_lea.vmem [#allocation3], 121
          %v1199 = vld [vmem:[%s1198] ss:$8 sm:$0x7]
          %v1203 = vrot.slane %v1195, 7
          %v1204 = vrot.slane %v1197, 6
          %v1205 = vsel %vm319, %v1196, %v1203
          %v1206 = vsel %vm321, %v1205, %v1204
          %v1208 = vmul.f32 %v1199, %v1206
          %v1209 = vadd.f32 %v1187, %v1208
          %1210 = vrot.lane.b32.xlu0 %v295, 83
          %v1211 = vpop.permute.xlu0 %1210
          %1212 = vrot.lane.b32.xlu0 %v296, 83
          %v1213 = vpop.permute.xlu0 %1212
          %1214 = vrot.lane.b32.xlu0 %v297, 83
          %v1215 = vpop.permute.xlu0 %1214
          %vm1216 = vcmp.lt.s32.totalorder %v308, 83
          %v1217 = vsel %vm1216, %v1213, %v1215
          %v1218 = vsel %vm1216, %v1211, %v1213
          %v1219 = vsel %vm1216, %v1215, %v1211
          %s1220 = scalar_lea.vmem [#allocation3], 122
          %v1221 = vld [vmem:[%s1220] ss:$8 sm:$0x7]
          %v1225 = vrot.slane %v1217, 7
          %v1226 = vrot.slane %v1219, 6
          %v1227 = vsel %vm319, %v1218, %v1225
          %v1228 = vsel %vm321, %v1227, %v1226
          %v1230 = vmul.f32 %v1221, %v1228
          %v1231 = vadd.f32 %v1209, %v1230
          %1232 = vrot.lane.b32.xlu0 %v295, 82
          %v1233 = vpop.permute.xlu0 %1232
          %1234 = vrot.lane.b32.xlu0 %v296, 82
          %v1235 = vpop.permute.xlu0 %1234
          %1236 = vrot.lane.b32.xlu0 %v297, 82
          %v1237 = vpop.permute.xlu0 %1236
          %vm1238 = vcmp.lt.s32.totalorder %v308, 82
          %v1239 = vsel %vm1238, %v1235, %v1237
          %v1240 = vsel %vm1238, %v1233, %v1235
          %v1241 = vsel %vm1238, %v1237, %v1233
          %s1242 = scalar_lea.vmem [#allocation3], 123
          %v1243 = vld [vmem:[%s1242] ss:$8 sm:$0x7]
          %v1247 = vrot.slane %v1239, 7
          %v1248 = vrot.slane %v1241, 6
          %v1249 = vsel %vm319, %v1240, %v1247
          %v1250 = vsel %vm321, %v1249, %v1248
          %v1252 = vmul.f32 %v1243, %v1250
          %v1253 = vadd.f32 %v1231, %v1252
          %1254 = vrot.lane.b32.xlu0 %v295, 81
          %v1255 = vpop.permute.xlu0 %1254
          %1256 = vrot.lane.b32.xlu0 %v296, 81
          %v1257 = vpop.permute.xlu0 %1256
          %1258 = vrot.lane.b32.xlu0 %v297, 81
          %v1259 = vpop.permute.xlu0 %1258
          %vm1260 = vcmp.lt.s32.totalorder %v308, 81
          %v1261 = vsel %vm1260, %v1257, %v1259
          %v1262 = vsel %vm1260, %v1255, %v1257
          %v1263 = vsel %vm1260, %v1259, %v1255
          %s1264 = scalar_lea.vmem [#allocation3], 124
          %v1265 = vld [vmem:[%s1264] ss:$8 sm:$0x7]
          %v1269 = vrot.slane %v1261, 7
          %v1270 = vrot.slane %v1263, 6
          %v1271 = vsel %vm319, %v1262, %v1269
          %v1272 = vsel %vm321, %v1271, %v1270
          %v1274 = vmul.f32 %v1265, %v1272
          %v1275 = vadd.f32 %v1253, %v1274
          %1276 = vrot.lane.b32.xlu0 %v295, 80
          %v1277 = vpop.permute.xlu0 %1276
          %1278 = vrot.lane.b32.xlu0 %v296, 80
          %v1279 = vpop.permute.xlu0 %1278
          %1280 = vrot.lane.b32.xlu0 %v297, 80
          %v1281 = vpop.permute.xlu0 %1280
          %vm1282 = vcmp.lt.s32.totalorder %v308, 80
          %v1283 = vsel %vm1282, %v1279, %v1281
          %v1284 = vsel %vm1282, %v1277, %v1279
          %v1285 = vsel %vm1282, %v1281, %v1277
          %s1286 = scalar_lea.vmem [#allocation3], 125
          %v1287 = vld [vmem:[%s1286] ss:$8 sm:$0x7]
          %v1291 = vrot.slane %v1283, 7
          %v1292 = vrot.slane %v1285, 6
          %v1293 = vsel %vm319, %v1284, %v1291
          %v1294 = vsel %vm321, %v1293, %v1292
          %v1296 = vmul.f32 %v1287, %v1294
          %v1297 = vadd.f32 %v1275, %v1296
          %1298 = vrot.lane.b32.xlu0 %v295, 79
          %v1299 = vpop.permute.xlu0 %1298
          %1300 = vrot.lane.b32.xlu0 %v296, 79
          %v1301 = vpop.permute.xlu0 %1300
          %1302 = vrot.lane.b32.xlu0 %v297, 79
          %v1303 = vpop.permute.xlu0 %1302
          %vm1304 = vcmp.lt.s32.totalorder %v308, 79
          %v1305 = vsel %vm1304, %v1301, %v1303
          %v1306 = vsel %vm1304, %v1299, %v1301
          %v1307 = vsel %vm1304, %v1303, %v1299
          %s1308 = scalar_lea.vmem [#allocation3], 126
          %v1309 = vld [vmem:[%s1308] ss:$8 sm:$0x7]
          %v1313 = vrot.slane %v1305, 7
          %v1314 = vrot.slane %v1307, 6
          %v1315 = vsel %vm319, %v1306, %v1313
          %v1316 = vsel %vm321, %v1315, %v1314
          %v1318 = vmul.f32 %v1309, %v1316
          %v1319 = vadd.f32 %v1297, %v1318
          %1320 = vrot.lane.b32.xlu0 %v295, 78
          %v1321 = vpop.permute.xlu0 %1320
          %1322 = vrot.lane.b32.xlu0 %v296, 78
          %v1323 = vpop.permute.xlu0 %1322
          %1324 = vrot.lane.b32.xlu0 %v297, 78
          %v1325 = vpop.permute.xlu0 %1324
          %vm1326 = vcmp.lt.s32.totalorder %v308, 78
          %v1327 = vsel %vm1326, %v1323, %v1325
          %v1328 = vsel %vm1326, %v1321, %v1323
          %v1329 = vsel %vm1326, %v1325, %v1321
          %s1330 = scalar_lea.vmem [#allocation3], 127
          %v1331 = vld [vmem:[%s1330] ss:$8 sm:$0x7]
          %v1335 = vrot.slane %v1327, 7
          %v1336 = vrot.slane %v1329, 6
          %v1337 = vsel %vm319, %v1328, %v1335
          %v1338 = vsel %vm321, %v1337, %v1336
          %v1340 = vmul.f32 %v1331, %v1338
          %v1341 = vadd.f32 %v1319, %v1340
          %1342 = vrot.lane.b32.xlu0 %v295, 77
          %v1343 = vpop.permute.xlu0 %1342
          %1344 = vrot.lane.b32.xlu0 %v296, 77
          %v1345 = vpop.permute.xlu0 %1344
          %1346 = vrot.lane.b32.xlu0 %v297, 77
          %v1347 = vpop.permute.xlu0 %1346
          %vm1348 = vcmp.lt.s32.totalorder %v308, 77
          %v1349 = vsel %vm1348, %v1345, %v1347
          %v1350 = vsel %vm1348, %v1343, %v1345
          %v1351 = vsel %vm1348, %v1347, %v1343
          %s1352 = scalar_lea.vmem [#allocation3], 144
          %v1353 = vld [vmem:[%s1352] ss:$8 sm:$0x7]
          %v1357 = vrot.slane %v1349, 7
          %v1358 = vrot.slane %v1351, 6
          %v1359 = vsel %vm319, %v1350, %v1357
          %v1360 = vsel %vm321, %v1359, %v1358
          %v1362 = vmul.f32 %v1353, %v1360
          %v1363 = vadd.f32 %v1341, %v1362
          %v1365 = vperm.slane %v293, 0
          %v1366 = vperm.slane %v293, 1
          %v1367 = vperm.slane %v293, 2
          %1371 = vrot.lane.b32.xlu0 %v1365, 51
          %v1372 = vpop.permute.xlu0 %1371
          %1373 = vrot.lane.b32.xlu0 %v1366, 51
          %v1374 = vpop.permute.xlu0 %1373
          %1375 = vrot.lane.b32.xlu0 %v1367, 51
          %v1376 = vpop.permute.xlu0 %1375
          %v1377 = vsel %vm309, %v1374, %v1376
          %v1378 = vsel %vm309, %v1372, %v1374
          %v1379 = vsel %vm309, %v1376, %v1372
          %s1380 = scalar_lea.vmem [#allocation3], 145
          %v1381 = vld [vmem:[%s1380] ss:$8 sm:$0x7]
          %v1385 = vrot.slane %v1378, 7
          %v1386 = vrot.slane %v1377, 6
          %v1387 = vsel %vm319, %v1379, %v1385
          %v1388 = vsel %vm321, %v1387, %v1386
          %v1390 = vmul.f32 %v1381, %v1388
          %v1391 = vadd.f32 %v1363, %v1390
          %1392 = vrot.lane.b32.xlu0 %v1365, 50
          %v1393 = vpop.permute.xlu0 %1392
          %1394 = vrot.lane.b32.xlu0 %v1366, 50
          %v1395 = vpop.permute.xlu0 %1394
          %1396 = vrot.lane.b32.xlu0 %v1367, 50
          %v1397 = vpop.permute.xlu0 %1396
          %v1398 = vsel %vm332, %v1395, %v1397
          %v1399 = vsel %vm332, %v1393, %v1395
          %v1400 = vsel %vm332, %v1397, %v1393
          %s1401 = scalar_lea.vmem [#allocation3], 146
          %v1402 = vld [vmem:[%s1401] ss:$8 sm:$0x7]
          %v1406 = vrot.slane %v1399, 7
          %v1407 = vrot.slane %v1398, 6
          %v1408 = vsel %vm319, %v1400, %v1406
          %v1409 = vsel %vm321, %v1408, %v1407
          %v1411 = vmul.f32 %v1402, %v1409
          %v1412 = vadd.f32 %v1391, %v1411
          %1413 = vrot.lane.b32.xlu0 %v1365, 49
          %v1414 = vpop.permute.xlu0 %1413
          %1415 = vrot.lane.b32.xlu0 %v1366, 49
          %v1416 = vpop.permute.xlu0 %1415
          %1417 = vrot.lane.b32.xlu0 %v1367, 49
          %v1418 = vpop.permute.xlu0 %1417
          %v1419 = vsel %vm354, %v1416, %v1418
          %v1420 = vsel %vm354, %v1414, %v1416
          %v1421 = vsel %vm354, %v1418, %v1414
          %s1422 = scalar_lea.vmem [#allocation3], 147
          %v1423 = vld [vmem:[%s1422] ss:$8 sm:$0x7]
          %v1427 = vrot.slane %v1420, 7
          %v1428 = vrot.slane %v1419, 6
          %v1429 = vsel %vm319, %v1421, %v1427
          %v1430 = vsel %vm321, %v1429, %v1428
          %v1432 = vmul.f32 %v1423, %v1430
          %v1433 = vadd.f32 %v1412, %v1432
          %1434 = vrot.lane.b32.xlu0 %v1365, 48
          %v1435 = vpop.permute.xlu0 %1434
          %1436 = vrot.lane.b32.xlu0 %v1366, 48
          %v1437 = vpop.permute.xlu0 %1436
          %1438 = vrot.lane.b32.xlu0 %v1367, 48
          %v1439 = vpop.permute.xlu0 %1438
          %v1440 = vsel %vm376, %v1437, %v1439
          %v1441 = vsel %vm376, %v1435, %v1437
          %v1442 = vsel %vm376, %v1439, %v1435
          %s1443 = scalar_lea.vmem [#allocation3], 148
          %v1444 = vld [vmem:[%s1443] ss:$8 sm:$0x7]
          %v1448 = vrot.slane %v1441, 7
          %v1449 = vrot.slane %v1440, 6
          %v1450 = vsel %vm319, %v1442, %v1448
          %v1451 = vsel %vm321, %v1450, %v1449
          %v1453 = vmul.f32 %v1444, %v1451
          %v1454 = vadd.f32 %v1433, %v1453
          %1455 = vrot.lane.b32.xlu0 %v1365, 47
          %v1456 = vpop.permute.xlu0 %1455
          %1457 = vrot.lane.b32.xlu0 %v1366, 47
          %v1458 = vpop.permute.xlu0 %1457
          %1459 = vrot.lane.b32.xlu0 %v1367, 47
          %v1460 = vpop.permute.xlu0 %1459
          %v1461 = vsel %vm398, %v1458, %v1460
          %v1462 = vsel %vm398, %v1456, %v1458
          %v1463 = vsel %vm398, %v1460, %v1456
          %s1464 = scalar_lea.vmem [#allocation3], 149
          %v1465 = vld [vmem:[%s1464] ss:$8 sm:$0x7]
          %v1469 = vrot.slane %v1462, 7
          %v1470 = vrot.slane %v1461, 6
          %v1471 = vsel %vm319, %v1463, %v1469
          %v1472 = vsel %vm321, %v1471, %v1470
          %v1474 = vmul.f32 %v1465, %v1472
          %v1475 = vadd.f32 %v1454, %v1474
          %1476 = vrot.lane.b32.xlu0 %v1365, 46
          %v1477 = vpop.permute.xlu0 %1476
          %1478 = vrot.lane.b32.xlu0 %v1366, 46
          %v1479 = vpop.permute.xlu0 %1478
          %1480 = vrot.lane.b32.xlu0 %v1367, 46
          %v1481 = vpop.permute.xlu0 %1480
          %v1482 = vsel %vm420, %v1479, %v1481
          %v1483 = vsel %vm420, %v1477, %v1479
          %v1484 = vsel %vm420, %v1481, %v1477
          %s1485 = scalar_lea.vmem [#allocation3], 150
          %v1486 = vld [vmem:[%s1485] ss:$8 sm:$0x7]
          %v1490 = vrot.slane %v1483, 7
          %v1491 = vrot.slane %v1482, 6
          %v1492 = vsel %vm319, %v1484, %v1490
          %v1493 = vsel %vm321, %v1492, %v1491
          %v1495 = vmul.f32 %v1486, %v1493
          %v1496 = vadd.f32 %v1475, %v1495
          %1497 = vrot.lane.b32.xlu0 %v1365, 45
          %v1498 = vpop.permute.xlu0 %1497
          %1499 = vrot.lane.b32.xlu0 %v1366, 45
          %v1500 = vpop.permute.xlu0 %1499
          %1501 = vrot.lane.b32.xlu0 %v1367, 45
          %v1502 = vpop.permute.xlu0 %1501
          %v1503 = vsel %vm442, %v1500, %v1502
          %v1504 = vsel %vm442, %v1498, %v1500
          %v1505 = vsel %vm442, %v1502, %v1498
          %s1506 = scalar_lea.vmem [#allocation3], 151
          %v1507 = vld [vmem:[%s1506] ss:$8 sm:$0x7]
          %v1511 = vrot.slane %v1504, 7
          %v1512 = vrot.slane %v1503, 6
          %v1513 = vsel %vm319, %v1505, %v1511
          %v1514 = vsel %vm321, %v1513, %v1512
          %v1516 = vmul.f32 %v1507, %v1514
          %v1517 = vadd.f32 %v1496, %v1516
          %1518 = vrot.lane.b32.xlu0 %v1365, 35
          %v1519 = vpop.permute.xlu0 %1518
          %1520 = vrot.lane.b32.xlu0 %v1366, 35
          %v1521 = vpop.permute.xlu0 %1520
          %1522 = vrot.lane.b32.xlu0 %v1367, 35
          %v1523 = vpop.permute.xlu0 %1522
          %v1524 = vsel %vm464, %v1521, %v1523
          %v1525 = vsel %vm464, %v1519, %v1521
          %v1526 = vsel %vm464, %v1523, %v1519
          %s1527 = scalar_lea.vmem [#allocation3], 168
          %v1528 = vld [vmem:[%s1527] ss:$8 sm:$0x7]
          %v1532 = vrot.slane %v1525, 7
          %v1533 = vrot.slane %v1524, 6
          %v1534 = vsel %vm319, %v1526, %v1532
          %v1535 = vsel %vm321, %v1534, %v1533
          %v1537 = vmul.f32 %v1528, %v1535
          %v1538 = vadd.f32 %v1517, %v1537
          %1539 = vrot.lane.b32.xlu0 %v1365, 34
          %v1540 = vpop.permute.xlu0 %1539
          %1541 = vrot.lane.b32.xlu0 %v1366, 34
          %v1542 = vpop.permute.xlu0 %1541
          %1543 = vrot.lane.b32.xlu0 %v1367, 34
          %v1544 = vpop.permute.xlu0 %1543
          %v1545 = vsel %vm486, %v1542, %v1544
          %v1546 = vsel %vm486, %v1540, %v1542
          %v1547 = vsel %vm486, %v1544, %v1540
          %s1548 = scalar_lea.vmem [#allocation3], 169
          %v1549 = vld [vmem:[%s1548] ss:$8 sm:$0x7]
          %v1553 = vrot.slane %v1546, 7
          %v1554 = vrot.slane %v1545, 6
          %v1555 = vsel %vm319, %v1547, %v1553
          %v1556 = vsel %vm321, %v1555, %v1554
          %v1558 = vmul.f32 %v1549, %v1556
          %v1559 = vadd.f32 %v1538, %v1558
          %1560 = vrot.lane.b32.xlu0 %v1365, 33
          %v1561 = vpop.permute.xlu0 %1560
          %1562 = vrot.lane.b32.xlu0 %v1366, 33
          %v1563 = vpop.permute.xlu0 %1562
          %1564 = vrot.lane.b32.xlu0 %v1367, 33
          %v1565 = vpop.permute.xlu0 %1564
          %v1566 = vsel %vm508, %v1563, %v1565
          %v1567 = vsel %vm508, %v1561, %v1563
          %v1568 = vsel %vm508, %v1565, %v1561
          %s1569 = scalar_lea.vmem [#allocation3], 170
          %v1570 = vld [vmem:[%s1569] ss:$8 sm:$0x7]
          %v1574 = vrot.slane %v1567, 7
          %v1575 = vrot.slane %v1566, 6
          %v1576 = vsel %vm319, %v1568, %v1574
          %v1577 = vsel %vm321, %v1576, %v1575
          %v1579 = vmul.f32 %v1570, %v1577
          %v1580 = vadd.f32 %v1559, %v1579
          %1581 = vrot.lane.b32.xlu0 %v1365, 32
          %v1582 = vpop.permute.xlu0 %1581
          %1583 = vrot.lane.b32.xlu0 %v1366, 32
          %v1584 = vpop.permute.xlu0 %1583
          %1585 = vrot.lane.b32.xlu0 %v1367, 32
          %v1586 = vpop.permute.xlu0 %1585
          %v1587 = vsel %vm530, %v1584, %v1586
          %v1588 = vsel %vm530, %v1582, %v1584
          %v1589 = vsel %vm530, %v1586, %v1582
          %s1590 = scalar_lea.vmem [#allocation3], 171
          %v1591 = vld [vmem:[%s1590] ss:$8 sm:$0x7]
          %v1595 = vrot.slane %v1588, 7
          %v1596 = vrot.slane %v1587, 6
          %v1597 = vsel %vm319, %v1589, %v1595
          %v1598 = vsel %vm321, %v1597, %v1596
          %v1600 = vmul.f32 %v1591, %v1598
          %v1601 = vadd.f32 %v1580, %v1600
          %1602 = vrot.lane.b32.xlu0 %v1365, 31
          %v1603 = vpop.permute.xlu0 %1602
          %1604 = vrot.lane.b32.xlu0 %v1366, 31
          %v1605 = vpop.permute.xlu0 %1604
          %1606 = vrot.lane.b32.xlu0 %v1367, 31
          %v1607 = vpop.permute.xlu0 %1606
          %v1608 = vsel %vm552, %v1605, %v1607
          %v1609 = vsel %vm552, %v1603, %v1605
          %v1610 = vsel %vm552, %v1607, %v1603
          %s1611 = scalar_lea.vmem [#allocation3], 172
          %v1612 = vld [vmem:[%s1611] ss:$8 sm:$0x7]
          %v1616 = vrot.slane %v1609, 7
          %v1617 = vrot.slane %v1608, 6
          %v1618 = vsel %vm319, %v1610, %v1616
          %v1619 = vsel %vm321, %v1618, %v1617
          %v1621 = vmul.f32 %v1612, %v1619
          %v1622 = vadd.f32 %v1601, %v1621
          %1623 = vrot.lane.b32.xlu0 %v1365, 30
          %v1624 = vpop.permute.xlu0 %1623
          %1625 = vrot.lane.b32.xlu0 %v1366, 30
          %v1626 = vpop.permute.xlu0 %1625
          %1627 = vrot.lane.b32.xlu0 %v1367, 30
          %v1628 = vpop.permute.xlu0 %1627
          %v1629 = vsel %vm574, %v1626, %v1628
          %v1630 = vsel %vm574, %v1624, %v1626
          %v1631 = vsel %vm574, %v1628, %v1624
          %s1632 = scalar_lea.vmem [#allocation3], 173
          %v1633 = vld [vmem:[%s1632] ss:$8 sm:$0x7]
          %v1637 = vrot.slane %v1630, 7
          %v1638 = vrot.slane %v1629, 6
          %v1639 = vsel %vm319, %v1631, %v1637
          %v1640 = vsel %vm321, %v1639, %v1638
          %v1642 = vmul.f32 %v1633, %v1640
          %v1643 = vadd.f32 %v1622, %v1642
          %1644 = vrot.lane.b32.xlu0 %v1365, 29
          %v1645 = vpop.permute.xlu0 %1644
          %1646 = vrot.lane.b32.xlu0 %v1366, 29
          %v1647 = vpop.permute.xlu0 %1646
          %1648 = vrot.lane.b32.xlu0 %v1367, 29
          %v1649 = vpop.permute.xlu0 %1648
          %v1650 = vsel %vm596, %v1647, %v1649
          %v1651 = vsel %vm596, %v1645, %v1647
          %v1652 = vsel %vm596, %v1649, %v1645
          %s1653 = scalar_lea.vmem [#allocation3], 174
          %v1654 = vld [vmem:[%s1653] ss:$8 sm:$0x7]
          %v1658 = vrot.slane %v1651, 7
          %v1659 = vrot.slane %v1650, 6
          %v1660 = vsel %vm319, %v1652, %v1658
          %v1661 = vsel %vm321, %v1660, %v1659
          %v1663 = vmul.f32 %v1654, %v1661
          %v1664 = vadd.f32 %v1643, %v1663
          %1665 = vrot.lane.b32.xlu0 %v1365, 19
          %v1666 = vpop.permute.xlu0 %1665
          %1667 = vrot.lane.b32.xlu0 %v1366, 19
          %v1668 = vpop.permute.xlu0 %1667
          %1669 = vrot.lane.b32.xlu0 %v1367, 19
          %v1670 = vpop.permute.xlu0 %1669
          %v1671 = vsel %vm618, %v1668, %v1670
          %v1672 = vsel %vm618, %v1666, %v1668
          %v1673 = vsel %vm618, %v1670, %v1666
          %s1674 = scalar_lea.vmem [#allocation3], 175
          %v1675 = vld [vmem:[%s1674] ss:$8 sm:$0x7]
          %v1679 = vrot.slane %v1672, 7
          %v1680 = vrot.slane %v1671, 6
          %v1681 = vsel %vm319, %v1673, %v1679
          %v1682 = vsel %vm321, %v1681, %v1680
          %v1684 = vmul.f32 %v1675, %v1682
          %v1685 = vadd.f32 %v1664, %v1684
          %1686 = vrot.lane.b32.xlu0 %v1365, 18
          %v1687 = vpop.permute.xlu0 %1686
          %1688 = vrot.lane.b32.xlu0 %v1366, 18
          %v1689 = vpop.permute.xlu0 %1688
          %1690 = vrot.lane.b32.xlu0 %v1367, 18
          %v1691 = vpop.permute.xlu0 %1690
          %v1692 = vsel %vm640, %v1689, %v1691
          %v1693 = vsel %vm640, %v1687, %v1689
          %v1694 = vsel %vm640, %v1691, %v1687
          %s1695 = scalar_lea.vmem [#allocation3], 192
          %v1696 = vld [vmem:[%s1695] ss:$8 sm:$0x7]
          %v1700 = vrot.slane %v1693, 7
          %v1701 = vrot.slane %v1692, 6
          %v1702 = vsel %vm319, %v1694, %v1700
          %v1703 = vsel %vm321, %v1702, %v1701
          %v1705 = vmul.f32 %v1696, %v1703
          %v1706 = vadd.f32 %v1685, %v1705
          %1707 = vrot.lane.b32.xlu0 %v1365, 17
          %v1708 = vpop.permute.xlu0 %1707
          %1709 = vrot.lane.b32.xlu0 %v1366, 17
          %v1710 = vpop.permute.xlu0 %1709
          %1711 = vrot.lane.b32.xlu0 %v1367, 17
          %v1712 = vpop.permute.xlu0 %1711
          %v1713 = vsel %vm662, %v1710, %v1712
          %v1714 = vsel %vm662, %v1708, %v1710
          %v1715 = vsel %vm662, %v1712, %v1708
          %s1716 = scalar_lea.vmem [#allocation3], 193
          %v1717 = vld [vmem:[%s1716] ss:$8 sm:$0x7]
          %v1721 = vrot.slane %v1714, 7
          %v1722 = vrot.slane %v1713, 6
          %v1723 = vsel %vm319, %v1715, %v1721
          %v1724 = vsel %vm321, %v1723, %v1722
          %v1726 = vmul.f32 %v1717, %v1724
          %v1727 = vadd.f32 %v1706, %v1726
          %1728 = vrot.lane.b32.xlu0 %v1365, 16
          %v1729 = vpop.permute.xlu0 %1728
          %1730 = vrot.lane.b32.xlu0 %v1366, 16
          %v1731 = vpop.permute.xlu0 %1730
          %1732 = vrot.lane.b32.xlu0 %v1367, 16
          %v1733 = vpop.permute.xlu0 %1732
          %v1734 = vsel %vm684, %v1731, %v1733
          %v1735 = vsel %vm684, %v1729, %v1731
          %v1736 = vsel %vm684, %v1733, %v1729
          %s1737 = scalar_lea.vmem [#allocation3], 194
          %v1738 = vld [vmem:[%s1737] ss:$8 sm:$0x7]
          %v1742 = vrot.slane %v1735, 7
          %v1743 = vrot.slane %v1734, 6
          %v1744 = vsel %vm319, %v1736, %v1742
          %v1745 = vsel %vm321, %v1744, %v1743
          %v1747 = vmul.f32 %v1738, %v1745
          %v1748 = vadd.f32 %v1727, %v1747
          %1749 = vrot.lane.b32.xlu0 %v1365, 15
          %v1750 = vpop.permute.xlu0 %1749
          %1751 = vrot.lane.b32.xlu0 %v1366, 15
          %v1752 = vpop.permute.xlu0 %1751
          %1753 = vrot.lane.b32.xlu0 %v1367, 15
          %v1754 = vpop.permute.xlu0 %1753
          %v1755 = vsel %vm706, %v1752, %v1754
          %v1756 = vsel %vm706, %v1750, %v1752
          %v1757 = vsel %vm706, %v1754, %v1750
          %s1758 = scalar_lea.vmem [#allocation3], 195
          %v1759 = vld [vmem:[%s1758] ss:$8 sm:$0x7]
          %v1763 = vrot.slane %v1756, 7
          %v1764 = vrot.slane %v1755, 6
          %v1765 = vsel %vm319, %v1757, %v1763
          %v1766 = vsel %vm321, %v1765, %v1764
          %v1768 = vmul.f32 %v1759, %v1766
          %v1769 = vadd.f32 %v1748, %v1768
          %1770 = vrot.lane.b32.xlu0 %v1365, 14
          %v1771 = vpop.permute.xlu0 %1770
          %1772 = vrot.lane.b32.xlu0 %v1366, 14
          %v1773 = vpop.permute.xlu0 %1772
          %1774 = vrot.lane.b32.xlu0 %v1367, 14
          %v1775 = vpop.permute.xlu0 %1774
          %v1776 = vsel %vm728, %v1773, %v1775
          %v1777 = vsel %vm728, %v1771, %v1773
          %v1778 = vsel %vm728, %v1775, %v1771
          %s1779 = scalar_lea.vmem [#allocation3], 196
          %v1780 = vld [vmem:[%s1779] ss:$8 sm:$0x7]
          %v1784 = vrot.slane %v1777, 7
          %v1785 = vrot.slane %v1776, 6
          %v1786 = vsel %vm319, %v1778, %v1784
          %v1787 = vsel %vm321, %v1786, %v1785
          %v1789 = vmul.f32 %v1780, %v1787
          %v1790 = vadd.f32 %v1769, %v1789
          %1791 = vrot.lane.b32.xlu0 %v1365, 13
          %v1792 = vpop.permute.xlu0 %1791
          %1793 = vrot.lane.b32.xlu0 %v1366, 13
          %v1794 = vpop.permute.xlu0 %1793
          %1795 = vrot.lane.b32.xlu0 %v1367, 13
          %v1796 = vpop.permute.xlu0 %1795
          %v1797 = vsel %vm750, %v1794, %v1796
          %v1798 = vsel %vm750, %v1792, %v1794
          %v1799 = vsel %vm750, %v1796, %v1792
          %s1800 = scalar_lea.vmem [#allocation3], 197
          %v1801 = vld [vmem:[%s1800] ss:$8 sm:$0x7]
          %v1805 = vrot.slane %v1798, 7
          %v1806 = vrot.slane %v1797, 6
          %v1807 = vsel %vm319, %v1799, %v1805
          %v1808 = vsel %vm321, %v1807, %v1806
          %v1810 = vmul.f32 %v1801, %v1808
          %v1811 = vadd.f32 %v1790, %v1810
          %1812 = vrot.lane.b32.xlu0 %v1365, 3
          %v1813 = vpop.permute.xlu0 %1812
          %1814 = vrot.lane.b32.xlu0 %v1366, 3
          %v1815 = vpop.permute.xlu0 %1814
          %1816 = vrot.lane.b32.xlu0 %v1367, 3
          %v1817 = vpop.permute.xlu0 %1816
          %v1818 = vsel %vm772, %v1815, %v1817
          %v1819 = vsel %vm772, %v1813, %v1815
          %v1820 = vsel %vm772, %v1817, %v1813
          %s1821 = scalar_lea.vmem [#allocation3], 198
          %v1822 = vld [vmem:[%s1821] ss:$8 sm:$0x7]
          %v1826 = vrot.slane %v1819, 7
          %v1827 = vrot.slane %v1818, 6
          %v1828 = vsel %vm319, %v1820, %v1826
          %v1829 = vsel %vm321, %v1828, %v1827
          %v1831 = vmul.f32 %v1822, %v1829
          %v1832 = vadd.f32 %v1811, %v1831
          %1833 = vrot.lane.b32.xlu0 %v1365, 2
          %v1834 = vpop.permute.xlu0 %1833
          %1835 = vrot.lane.b32.xlu0 %v1366, 2
          %v1836 = vpop.permute.xlu0 %1835
          %1837 = vrot.lane.b32.xlu0 %v1367, 2
          %v1838 = vpop.permute.xlu0 %1837
          %v1839 = vsel %vm794, %v1836, %v1838
          %v1840 = vsel %vm794, %v1834, %v1836
          %v1841 = vsel %vm794, %v1838, %v1834
          %s1842 = scalar_lea.vmem [#allocation3], 199
          %v1843 = vld [vmem:[%s1842] ss:$8 sm:$0x7]
          %v1847 = vrot.slane %v1840, 7
          %v1848 = vrot.slane %v1839, 6
          %v1849 = vsel %vm319, %v1841, %v1847
          %v1850 = vsel %vm321, %v1849, %v1848
          %v1852 = vmul.f32 %v1843, %v1850
          %v1853 = vadd.f32 %v1832, %v1852
          %1854 = vrot.lane.b32.xlu0 %v1365, 1
          %v1855 = vpop.permute.xlu0 %1854
          %1856 = vrot.lane.b32.xlu0 %v1366, 1
          %v1857 = vpop.permute.xlu0 %1856
          %1858 = vrot.lane.b32.xlu0 %v1367, 1
          %v1859 = vpop.permute.xlu0 %1858
          %v1860 = vsel %vm816, %v1857, %v1859
          %v1861 = vsel %vm816, %v1855, %v1857
          %v1862 = vsel %vm816, %v1859, %v1855
          %s1863 = scalar_lea.vmem [#allocation3], 216
          %v1864 = vld [vmem:[%s1863] ss:$8 sm:$0x7]
          %v1868 = vrot.slane %v1861, 7
          %v1869 = vrot.slane %v1860, 6
          %v1870 = vsel %vm319, %v1862, %v1868
          %v1871 = vsel %vm321, %v1870, %v1869
          %v1873 = vmul.f32 %v1864, %v1871
          %v1874 = vadd.f32 %v1853, %v1873
          %s1875 = scalar_lea.vmem [#allocation3], 217
          %v1876 = vld [vmem:[%s1875] ss:$8 sm:$0x7]
          %v1877 = vmul.f32 %v1876, %v293
          %v1878 = vadd.f32 %v1874, %v1877
          %1879 = vrot.lane.b32.xlu0 %v1365, 127
          %v1880 = vpop.permute.xlu0 %1879
          %1881 = vrot.lane.b32.xlu0 %v1366, 127
          %v1882 = vpop.permute.xlu0 %1881
          %1883 = vrot.lane.b32.xlu0 %v1367, 127
          %v1884 = vpop.permute.xlu0 %1883
          %v1885 = vsel %vm842, %v1882, %v1884
          %v1886 = vsel %vm842, %v1880, %v1882
          %v1887 = vsel %vm842, %v1884, %v1880
          %s1888 = scalar_lea.vmem [#allocation3], 218
          %v1889 = vld [vmem:[%s1888] ss:$8 sm:$0x7]
          %v1893 = vrot.slane %v1885, 7
          %v1894 = vrot.slane %v1887, 6
          %v1895 = vsel %vm319, %v1886, %v1893
          %v1896 = vsel %vm321, %v1895, %v1894
          %v1898 = vmul.f32 %v1889, %v1896
          %v1899 = vadd.f32 %v1878, %v1898
          %1900 = vrot.lane.b32.xlu0 %v1365, 126
          %v1901 = vpop.permute.xlu0 %1900
          %1902 = vrot.lane.b32.xlu0 %v1366, 126
          %v1903 = vpop.permute.xlu0 %1902
          %1904 = vrot.lane.b32.xlu0 %v1367, 126
          %v1905 = vpop.permute.xlu0 %1904
          %v1906 = vsel %vm864, %v1903, %v1905
          %v1907 = vsel %vm864, %v1901, %v1903
          %v1908 = vsel %vm864, %v1905, %v1901
          %s1909 = scalar_lea.vmem [#allocation3], 219
          %v1910 = vld [vmem:[%s1909] ss:$8 sm:$0x7]
          %v1914 = vrot.slane %v1906, 7
          %v1915 = vrot.slane %v1908, 6
          %v1916 = vsel %vm319, %v1907, %v1914
          %v1917 = vsel %vm321, %v1916, %v1915
          %v1919 = vmul.f32 %v1910, %v1917
          %v1920 = vadd.f32 %v1899, %v1919
          %1921 = vrot.lane.b32.xlu0 %v1365, 125
          %v1922 = vpop.permute.xlu0 %1921
          %1923 = vrot.lane.b32.xlu0 %v1366, 125
          %v1924 = vpop.permute.xlu0 %1923
          %1925 = vrot.lane.b32.xlu0 %v1367, 125
          %v1926 = vpop.permute.xlu0 %1925
          %v1927 = vsel %vm886, %v1924, %v1926
          %v1928 = vsel %vm886, %v1922, %v1924
          %v1929 = vsel %vm886, %v1926, %v1922
          %s1930 = scalar_lea.vmem [#allocation3], 220
          %v1931 = vld [vmem:[%s1930] ss:$8 sm:$0x7]
          %v1935 = vrot.slane %v1927, 7
          %v1936 = vrot.slane %v1929, 6
          %v1937 = vsel %vm319, %v1928, %v1935
          %v1938 = vsel %vm321, %v1937, %v1936
          %v1940 = vmul.f32 %v1931, %v1938
          %v1941 = vadd.f32 %v1920, %v1940
          %1942 = vrot.lane.b32.xlu0 %v1365, 115
          %v1943 = vpop.permute.xlu0 %1942
          %1944 = vrot.lane.b32.xlu0 %v1366, 115
          %v1945 = vpop.permute.xlu0 %1944
          %1946 = vrot.lane.b32.xlu0 %v1367, 115
          %v1947 = vpop.permute.xlu0 %1946
          %v1948 = vsel %vm908, %v1945, %v1947
          %v1949 = vsel %vm908, %v1943, %v1945
          %v1950 = vsel %vm908, %v1947, %v1943
          %s1951 = scalar_lea.vmem [#allocation3], 221
          %v1952 = vld [vmem:[%s1951] ss:$8 sm:$0x7]
          %v1956 = vrot.slane %v1948, 7
          %v1957 = vrot.slane %v1950, 6
          %v1958 = vsel %vm319, %v1949, %v1956
          %v1959 = vsel %vm321, %v1958, %v1957
          %v1961 = vmul.f32 %v1952, %v1959
          %v1962 = vadd.f32 %v1941, %v1961
          %1963 = vrot.lane.b32.xlu0 %v1365, 114
          %v1964 = vpop.permute.xlu0 %1963
          %1965 = vrot.lane.b32.xlu0 %v1366, 114
          %v1966 = vpop.permute.xlu0 %1965
          %1967 = vrot.lane.b32.xlu0 %v1367, 114
          %v1968 = vpop.permute.xlu0 %1967
          %v1969 = vsel %vm930, %v1966, %v1968
          %v1970 = vsel %vm930, %v1964, %v1966
          %v1971 = vsel %vm930, %v1968, %v1964
          %s1972 = scalar_lea.vmem [#allocation3], 222
          %v1973 = vld [vmem:[%s1972] ss:$8 sm:$0x7]
          %v1977 = vrot.slane %v1969, 7
          %v1978 = vrot.slane %v1971, 6
          %v1979 = vsel %vm319, %v1970, %v1977
          %v1980 = vsel %vm321, %v1979, %v1978
          %v1982 = vmul.f32 %v1973, %v1980
          %v1983 = vadd.f32 %v1962, %v1982
          %1984 = vrot.lane.b32.xlu0 %v1365, 113
          %v1985 = vpop.permute.xlu0 %1984
          %1986 = vrot.lane.b32.xlu0 %v1366, 113
          %v1987 = vpop.permute.xlu0 %1986
          %1988 = vrot.lane.b32.xlu0 %v1367, 113
          %v1989 = vpop.permute.xlu0 %1988
          %v1990 = vsel %vm952, %v1987, %v1989
          %v1991 = vsel %vm952, %v1985, %v1987
          %v1992 = vsel %vm952, %v1989, %v1985
          %s1993 = scalar_lea.vmem [#allocation3], 223
          %v1994 = vld [vmem:[%s1993] ss:$8 sm:$0x7]
          %v1998 = vrot.slane %v1990, 7
          %v1999 = vrot.slane %v1992, 6
          %v2000 = vsel %vm319, %v1991, %v1998
          %v2001 = vsel %vm321, %v2000, %v1999
          %v2003 = vmul.f32 %v1994, %v2001
          %v2004 = vadd.f32 %v1983, %v2003
          %2005 = vrot.lane.b32.xlu0 %v1365, 112
          %v2006 = vpop.permute.xlu0 %2005
          %2007 = vrot.lane.b32.xlu0 %v1366, 112
          %v2008 = vpop.permute.xlu0 %2007
          %2009 = vrot.lane.b32.xlu0 %v1367, 112
          %v2010 = vpop.permute.xlu0 %2009
          %v2011 = vsel %vm974, %v2008, %v2010
          %v2012 = vsel %vm974, %v2006, %v2008
          %v2013 = vsel %vm974, %v2010, %v2006
          %s2014 = scalar_lea.vmem [#allocation3], 240
          %v2015 = vld [vmem:[%s2014] ss:$8 sm:$0x7]
          %v2019 = vrot.slane %v2011, 7
          %v2020 = vrot.slane %v2013, 6
          %v2021 = vsel %vm319, %v2012, %v2019
          %v2022 = vsel %vm321, %v2021, %v2020
          %v2024 = vmul.f32 %v2015, %v2022
          %v2025 = vadd.f32 %v2004, %v2024
          %2026 = vrot.lane.b32.xlu0 %v1365, 111
          %v2027 = vpop.permute.xlu0 %2026
          %2028 = vrot.lane.b32.xlu0 %v1366, 111
          %v2029 = vpop.permute.xlu0 %2028
          %2030 = vrot.lane.b32.xlu0 %v1367, 111
          %v2031 = vpop.permute.xlu0 %2030
          %v2032 = vsel %vm996, %v2029, %v2031
          %v2033 = vsel %vm996, %v2027, %v2029
          %v2034 = vsel %vm996, %v2031, %v2027
          %s2035 = scalar_lea.vmem [#allocation3], 241
          %v2036 = vld [vmem:[%s2035] ss:$8 sm:$0x7]
          %v2040 = vrot.slane %v2032, 7
          %v2041 = vrot.slane %v2034, 6
          %v2042 = vsel %vm319, %v2033, %v2040
          %v2043 = vsel %vm321, %v2042, %v2041
          %v2045 = vmul.f32 %v2036, %v2043
          %v2046 = vadd.f32 %v2025, %v2045
          %2047 = vrot.lane.b32.xlu0 %v1365, 110
          %v2048 = vpop.permute.xlu0 %2047
          %2049 = vrot.lane.b32.xlu0 %v1366, 110
          %v2050 = vpop.permute.xlu0 %2049
          %2051 = vrot.lane.b32.xlu0 %v1367, 110
          %v2052 = vpop.permute.xlu0 %2051
          %v2053 = vsel %vm1018, %v2050, %v2052
          %v2054 = vsel %vm1018, %v2048, %v2050
          %v2055 = vsel %vm1018, %v2052, %v2048
          %s2056 = scalar_lea.vmem [#allocation3], 242
          %v2057 = vld [vmem:[%s2056] ss:$8 sm:$0x7]
          %v2061 = vrot.slane %v2053, 7
          %v2062 = vrot.slane %v2055, 6
          %v2063 = vsel %vm319, %v2054, %v2061
          %v2064 = vsel %vm321, %v2063, %v2062
          %v2066 = vmul.f32 %v2057, %v2064
          %v2067 = vadd.f32 %v2046, %v2066
          %2068 = vrot.lane.b32.xlu0 %v1365, 109
          %v2069 = vpop.permute.xlu0 %2068
          %2070 = vrot.lane.b32.xlu0 %v1366, 109
          %v2071 = vpop.permute.xlu0 %2070
          %2072 = vrot.lane.b32.xlu0 %v1367, 109
          %v2073 = vpop.permute.xlu0 %2072
          %v2074 = vsel %vm1040, %v2071, %v2073
          %v2075 = vsel %vm1040, %v2069, %v2071
          %v2076 = vsel %vm1040, %v2073, %v2069
          %s2077 = scalar_lea.vmem [#allocation3], 243
          %v2078 = vld [vmem:[%s2077] ss:$8 sm:$0x7]
          %v2082 = vrot.slane %v2074, 7
          %v2083 = vrot.slane %v2076, 6
          %v2084 = vsel %vm319, %v2075, %v2082
          %v2085 = vsel %vm321, %v2084, %v2083
          %v2087 = vmul.f32 %v2078, %v2085
          %v2088 = vadd.f32 %v2067, %v2087
          %2089 = vrot.lane.b32.xlu0 %v1365, 99
          %v2090 = vpop.permute.xlu0 %2089
          %2091 = vrot.lane.b32.xlu0 %v1366, 99
          %v2092 = vpop.permute.xlu0 %2091
          %2093 = vrot.lane.b32.xlu0 %v1367, 99
          %v2094 = vpop.permute.xlu0 %2093
          %v2095 = vsel %vm1062, %v2092, %v2094
          %v2096 = vsel %vm1062, %v2090, %v2092
          %v2097 = vsel %vm1062, %v2094, %v2090
          %s2098 = scalar_lea.vmem [#allocation3], 244
          %v2099 = vld [vmem:[%s2098] ss:$8 sm:$0x7]
          %v2103 = vrot.slane %v2095, 7
          %v2104 = vrot.slane %v2097, 6
          %v2105 = vsel %vm319, %v2096, %v2103
          %v2106 = vsel %vm321, %v2105, %v2104
          %v2108 = vmul.f32 %v2099, %v2106
          %v2109 = vadd.f32 %v2088, %v2108
          %2110 = vrot.lane.b32.xlu0 %v1365, 98
          %v2111 = vpop.permute.xlu0 %2110
          %2112 = vrot.lane.b32.xlu0 %v1366, 98
          %v2113 = vpop.permute.xlu0 %2112
          %2114 = vrot.lane.b32.xlu0 %v1367, 98
          %v2115 = vpop.permute.xlu0 %2114
          %v2116 = vsel %vm1084, %v2113, %v2115
          %v2117 = vsel %vm1084, %v2111, %v2113
          %v2118 = vsel %vm1084, %v2115, %v2111
          %s2119 = scalar_lea.vmem [#allocation3], 245
          %v2120 = vld [vmem:[%s2119] ss:$8 sm:$0x7]
          %v2124 = vrot.slane %v2116, 7
          %v2125 = vrot.slane %v2118, 6
          %v2126 = vsel %vm319, %v2117, %v2124
          %v2127 = vsel %vm321, %v2126, %v2125
          %v2129 = vmul.f32 %v2120, %v2127
          %v2130 = vadd.f32 %v2109, %v2129
          %2131 = vrot.lane.b32.xlu0 %v1365, 97
          %v2132 = vpop.permute.xlu0 %2131
          %2133 = vrot.lane.b32.xlu0 %v1366, 97
          %v2134 = vpop.permute.xlu0 %2133
          %2135 = vrot.lane.b32.xlu0 %v1367, 97
          %v2136 = vpop.permute.xlu0 %2135
          %v2137 = vsel %vm1106, %v2134, %v2136
          %v2138 = vsel %vm1106, %v2132, %v2134
          %v2139 = vsel %vm1106, %v2136, %v2132
          %s2140 = scalar_lea.vmem [#allocation3], 246
          %v2141 = vld [vmem:[%s2140] ss:$8 sm:$0x7]
          %v2145 = vrot.slane %v2137, 7
          %v2146 = vrot.slane %v2139, 6
          %v2147 = vsel %vm319, %v2138, %v2145
          %v2148 = vsel %vm321, %v2147, %v2146
          %v2150 = vmul.f32 %v2141, %v2148
          %v2151 = vadd.f32 %v2130, %v2150
          %2152 = vrot.lane.b32.xlu0 %v1365, 96
          %v2153 = vpop.permute.xlu0 %2152
          %2154 = vrot.lane.b32.xlu0 %v1366, 96
          %v2155 = vpop.permute.xlu0 %2154
          %2156 = vrot.lane.b32.xlu0 %v1367, 96
          %v2157 = vpop.permute.xlu0 %2156
          %v2158 = vsel %vm1128, %v2155, %v2157
          %v2159 = vsel %vm1128, %v2153, %v2155
          %v2160 = vsel %vm1128, %v2157, %v2153
          %s2161 = scalar_lea.vmem [#allocation3], 247
          %v2162 = vld [vmem:[%s2161] ss:$8 sm:$0x7]
          %v2166 = vrot.slane %v2158, 7
          %v2167 = vrot.slane %v2160, 6
          %v2168 = vsel %vm319, %v2159, %v2166
          %v2169 = vsel %vm321, %v2168, %v2167
          %v2171 = vmul.f32 %v2162, %v2169
          %v2172 = vadd.f32 %v2151, %v2171
          %2173 = vrot.lane.b32.xlu0 %v1365, 95
          %v2174 = vpop.permute.xlu0 %2173
          %2175 = vrot.lane.b32.xlu0 %v1366, 95
          %v2176 = vpop.permute.xlu0 %2175
          %2177 = vrot.lane.b32.xlu0 %v1367, 95
          %v2178 = vpop.permute.xlu0 %2177
          %v2179 = vsel %vm1150, %v2176, %v2178
          %v2180 = vsel %vm1150, %v2174, %v2176
          %v2181 = vsel %vm1150, %v2178, %v2174
          %s2182 = scalar_lea.vmem [#allocation3], 264
          %v2183 = vld [vmem:[%s2182] ss:$8 sm:$0x7]
          %v2187 = vrot.slane %v2179, 7
          %v2188 = vrot.slane %v2181, 6
          %v2189 = vsel %vm319, %v2180, %v2187
          %v2190 = vsel %vm321, %v2189, %v2188
          %v2192 = vmul.f32 %v2183, %v2190
          %v2193 = vadd.f32 %v2172, %v2192
          %2194 = vrot.lane.b32.xlu0 %v1365, 94
          %v2195 = vpop.permute.xlu0 %2194
          %2196 = vrot.lane.b32.xlu0 %v1366, 94
          %v2197 = vpop.permute.xlu0 %2196
          %2198 = vrot.lane.b32.xlu0 %v1367, 94
          %v2199 = vpop.permute.xlu0 %2198
          %v2200 = vsel %vm1172, %v2197, %v2199
          %v2201 = vsel %vm1172, %v2195, %v2197
          %v2202 = vsel %vm1172, %v2199, %v2195
          %s2203 = scalar_lea.vmem [#allocation3], 265
          %v2204 = vld [vmem:[%s2203] ss:$8 sm:$0x7]
          %v2208 = vrot.slane %v2200, 7
          %v2209 = vrot.slane %v2202, 6
          %v2210 = vsel %vm319, %v2201, %v2208
          %v2211 = vsel %vm321, %v2210, %v2209
          %v2213 = vmul.f32 %v2204, %v2211
          %v2214 = vadd.f32 %v2193, %v2213
          %2215 = vrot.lane.b32.xlu0 %v1365, 93
          %v2216 = vpop.permute.xlu0 %2215
          %2217 = vrot.lane.b32.xlu0 %v1366, 93
          %v2218 = vpop.permute.xlu0 %2217
          %2219 = vrot.lane.b32.xlu0 %v1367, 93
          %v2220 = vpop.permute.xlu0 %2219
          %v2221 = vsel %vm1194, %v2218, %v2220
          %v2222 = vsel %vm1194, %v2216, %v2218
          %v2223 = vsel %vm1194, %v2220, %v2216
          %s2224 = scalar_lea.vmem [#allocation3], 266
          %v2225 = vld [vmem:[%s2224] ss:$8 sm:$0x7]
          %v2229 = vrot.slane %v2221, 7
          %v2230 = vrot.slane %v2223, 6
          %v2231 = vsel %vm319, %v2222, %v2229
          %v2232 = vsel %vm321, %v2231, %v2230
          %v2234 = vmul.f32 %v2225, %v2232
          %v2235 = vadd.f32 %v2214, %v2234
          %2236 = vrot.lane.b32.xlu0 %v1365, 83
          %v2237 = vpop.permute.xlu0 %2236
          %2238 = vrot.lane.b32.xlu0 %v1366, 83
          %v2239 = vpop.permute.xlu0 %2238
          %2240 = vrot.lane.b32.xlu0 %v1367, 83
          %v2241 = vpop.permute.xlu0 %2240
          %v2242 = vsel %vm1216, %v2239, %v2241
          %v2243 = vsel %vm1216, %v2237, %v2239
          %v2244 = vsel %vm1216, %v2241, %v2237
          %s2245 = scalar_lea.vmem [#allocation3], 267
          %v2246 = vld [vmem:[%s2245] ss:$8 sm:$0x7]
          %v2250 = vrot.slane %v2242, 7
          %v2251 = vrot.slane %v2244, 6
          %v2252 = vsel %vm319, %v2243, %v2250
          %v2253 = vsel %vm321, %v2252, %v2251
          %v2255 = vmul.f32 %v2246, %v2253
          %v2256 = vadd.f32 %v2235, %v2255
          %2257 = vrot.lane.b32.xlu0 %v1365, 82
          %v2258 = vpop.permute.xlu0 %2257
          %2259 = vrot.lane.b32.xlu0 %v1366, 82
          %v2260 = vpop.permute.xlu0 %2259
          %2261 = vrot.lane.b32.xlu0 %v1367, 82
          %v2262 = vpop.permute.xlu0 %2261
          %v2263 = vsel %vm1238, %v2260, %v2262
          %v2264 = vsel %vm1238, %v2258, %v2260
          %v2265 = vsel %vm1238, %v2262, %v2258
          %s2266 = scalar_lea.vmem [#allocation3], 268
          %v2267 = vld [vmem:[%s2266] ss:$8 sm:$0x7]
          %v2271 = vrot.slane %v2263, 7
          %v2272 = vrot.slane %v2265, 6
          %v2273 = vsel %vm319, %v2264, %v2271
          %v2274 = vsel %vm321, %v2273, %v2272
          %v2276 = vmul.f32 %v2267, %v2274
          %v2277 = vadd.f32 %v2256, %v2276
          %2278 = vrot.lane.b32.xlu0 %v1365, 81
          %v2279 = vpop.permute.xlu0 %2278
          %2280 = vrot.lane.b32.xlu0 %v1366, 81
          %v2281 = vpop.permute.xlu0 %2280
          %2282 = vrot.lane.b32.xlu0 %v1367, 81
          %v2283 = vpop.permute.xlu0 %2282
          %v2284 = vsel %vm1260, %v2281, %v2283
          %v2285 = vsel %vm1260, %v2279, %v2281
          %v2286 = vsel %vm1260, %v2283, %v2279
          %s2287 = scalar_lea.vmem [#allocation3], 269
          %v2288 = vld [vmem:[%s2287] ss:$8 sm:$0x7]
          %v2292 = vrot.slane %v2284, 7
          %v2293 = vrot.slane %v2286, 6
          %v2294 = vsel %vm319, %v2285, %v2292
          %v2295 = vsel %vm321, %v2294, %v2293
          %v2297 = vmul.f32 %v2288, %v2295
          %v2298 = vadd.f32 %v2277, %v2297
          %2299 = vrot.lane.b32.xlu0 %v1365, 80
          %v2300 = vpop.permute.xlu0 %2299
          %2301 = vrot.lane.b32.xlu0 %v1366, 80
          %v2302 = vpop.permute.xlu0 %2301
          %2303 = vrot.lane.b32.xlu0 %v1367, 80
          %v2304 = vpop.permute.xlu0 %2303
          %v2305 = vsel %vm1282, %v2302, %v2304
          %v2306 = vsel %vm1282, %v2300, %v2302
          %v2307 = vsel %vm1282, %v2304, %v2300
          %s2308 = scalar_lea.vmem [#allocation3], 270
          %v2309 = vld [vmem:[%s2308] ss:$8 sm:$0x7]
          %v2313 = vrot.slane %v2305, 7
          %v2314 = vrot.slane %v2307, 6
          %v2315 = vsel %vm319, %v2306, %v2313
          %v2316 = vsel %vm321, %v2315, %v2314
          %v2318 = vmul.f32 %v2309, %v2316
          %v2319 = vadd.f32 %v2298, %v2318
          %2320 = vrot.lane.b32.xlu0 %v1365, 79
          %v2321 = vpop.permute.xlu0 %2320
          %2322 = vrot.lane.b32.xlu0 %v1366, 79
          %v2323 = vpop.permute.xlu0 %2322
          %2324 = vrot.lane.b32.xlu0 %v1367, 79
          %v2325 = vpop.permute.xlu0 %2324
          %v2326 = vsel %vm1304, %v2323, %v2325
          %v2327 = vsel %vm1304, %v2321, %v2323
          %v2328 = vsel %vm1304, %v2325, %v2321
          %s2329 = scalar_lea.vmem [#allocation3], 271
          %v2330 = vld [vmem:[%s2329] ss:$8 sm:$0x7]
          %v2334 = vrot.slane %v2326, 7
          %v2335 = vrot.slane %v2328, 6
          %v2336 = vsel %vm319, %v2327, %v2334
          %v2337 = vsel %vm321, %v2336, %v2335
          %v2339 = vmul.f32 %v2330, %v2337
          %v2340 = vadd.f32 %v2319, %v2339
          %2341 = vrot.lane.b32.xlu0 %v1365, 78
          %v2342 = vpop.permute.xlu0 %2341
          %2343 = vrot.lane.b32.xlu0 %v1366, 78
          %v2344 = vpop.permute.xlu0 %2343
          %2345 = vrot.lane.b32.xlu0 %v1367, 78
          %v2346 = vpop.permute.xlu0 %2345
          %v2347 = vsel %vm1326, %v2344, %v2346
          %v2348 = vsel %vm1326, %v2342, %v2344
          %v2349 = vsel %vm1326, %v2346, %v2342
          %s2350 = scalar_lea.vmem [#allocation3], 288
          %v2351 = vld [vmem:[%s2350] ss:$8 sm:$0x7]
          %v2355 = vrot.slane %v2347, 7
          %v2356 = vrot.slane %v2349, 6
          %v2357 = vsel %vm319, %v2348, %v2355
          %v2358 = vsel %vm321, %v2357, %v2356
          %v2360 = vmul.f32 %v2351, %v2358
          %v2361 = vadd.f32 %v2340, %v2360
          %2362 = vrot.lane.b32.xlu0 %v1365, 77
          %v2363 = vpop.permute.xlu0 %2362
          %2364 = vrot.lane.b32.xlu0 %v1366, 77
          %v2365 = vpop.permute.xlu0 %2364
          %2366 = vrot.lane.b32.xlu0 %v1367, 77
          %v2367 = vpop.permute.xlu0 %2366
          %v2368 = vsel %vm1348, %v2365, %v2367
          %v2369 = vsel %vm1348, %v2363, %v2365
          %v2370 = vsel %vm1348, %v2367, %v2363
          %s2371 = scalar_lea.vmem [#allocation3], 289
          %v2372 = vld [vmem:[%s2371] ss:$8 sm:$0x7]
          %v2376 = vrot.slane %v2368, 7
          %v2377 = vrot.slane %v2370, 6
          %v2378 = vsel %vm319, %v2369, %v2376
          %v2379 = vsel %vm321, %v2378, %v2377
          %v2381 = vmul.f32 %v2372, %v2379
          %v2382 = vadd.f32 %v2361, %v2381
          %v2383 = vxor.u32 %v2382, 2147483648
          %v2384 = vmul.f32 %v2383, 1.442695
          %v2385 = vpow.pop %v2384
          %v2386 = vadd.f32 %v2385, 1.0
          %v2387 = vrcp.pop %v2386
          %v2388 = vmul.f32 %v2386, %v2387
          %v2389 = vsub.f32 1.0, %v2388
          %v2390 = vmul.f32 %v2387, %v2389
          %v2391 = vadd.f32 %v2387, %v2390
          %vm2392 = vweird.f32 %v2386
          %vm2393 = vweird.f32 %v2387
          %vm2394 = vmor %vm2392, %vm2393
          %v2395 = vsel %vm2394, %v2387, %v2391
          %v2396 = vand.u32 2147483647, %v2386
          %vm2397 = vcmp.eq.f32.partialorder %v2396, 8.507059e+37
          %v2398 = vand.u32 %v2386, 2147483648
          %v2399 = vor.u32 1.1754944e-38, %v2398
          %v2400 = vsel %vm2397, %v2399, %v2395
          %v2401 = vmul.f32 1.0, %v2400
          %v2402 = vlaneseq
          %vm2403 = vcmp.ge.s32.totalorder %v2402, 0
          %vm2404 = vcmp.lt.s32.totalorder %v2402, 256
          %vm2405 = vmand %vm2403, %vm2404
          %2406 = vst.msk [vmem:[%s194] sm:$0x3] %vm2405, %v2401
        $region48: #{tpu_custom_call.1} parent=27 // pred_fallthru
          _
        %s2407 = sand.u32 %s89, 1
        %s2408 = scalar_lea.sflag [#allocation5], %s2407
        %s2409 = sand.u32 %s89, 1
        %s2410 = smul.addr %s2409, 2
        %s2411 = scalar_lea.vmem [#allocation8], %s2410
        // Predicated region
        $region49: #{tpu_custom_call.1} parent=27 // pred_check
          %p2412 = pneg %p99
        $region50: #{tpu_custom_call.1} parent=27 // pred_check_branch
          %2414 = sbr.rel (%p2412) target = $region52
        $region51: #{tpu_custom_call.1} parent=27 // pred_region
          %2416 = vsyncadd %s2408, 0
          %s2417 = smul.addr %s24, 2
          %s2418 = scalar_lea.hbm %s2, %s2417
          %s2420 = sshll.u32 %s2411, 4
          %s2421 = int_to_ptr.vmem [resolvable:$true] %s2420
          %s2422 = sshll.u32 %s2418, 4
          %s2423 = int_to_ptr.hbm [resolvable:$true] %s2422
          %2425 = dma.vmem_to_hbm [thread:$0]  %s2421, 32, %s2423, %s2408
        $region52: #{tpu_custom_call.1} parent=27 // pred_fallthru
          _
      $region28: #{tpu_custom_call.1} parent=5 // pred_fallthru
        _
      %p2426 = scmp.le.s32.totalorder 2, %s15
      // Predicated region
      $region53: #{tpu_custom_call.1} parent=5 // pred_check
        %p2427 = pneg %p2426
      $region54: #{tpu_custom_call.1} parent=5 // pred_check_branch
        %2429 = sbr.rel (%p2427) target = $region56
      $region55: #{tpu_custom_call.1} parent=5 // pred_region
        %s2430 = ssub.s32 %s15, 2
        // Predicated region
        $region57: #{tpu_custom_call.1} parent=55 // pred_check
          %p2431 = pneg %p105
        $region58: #{tpu_custom_call.1} parent=55 // pred_check_branch
          %2433 = sbr.rel (%p2431) target = $region60
        $region59: #{tpu_custom_call.1} parent=55 // pred_region
          %s2434 = sand.u32 %s90, 1
          %s2435 = scalar_lea.sflag [#allocation5], %s2434
          %s2436 = sand.u32 %s90, 1
          %s2437 = smul.addr %s2436, 2
          %s2438 = scalar_lea.vmem [#allocation8], %s2437
          %2440 = dma.done %s2435, 32
        $region60: #{tpu_custom_call.1} parent=55 // pred_fallthru
          _
      $region56: #{tpu_custom_call.1} parent=5 // pred_fallthru
        _
    $region6: #{tpu_custom_call.1} parent=1 // loop_footer
      %s19 = sadd.s32 1, %s15
    $region7: #{tpu_custom_call.1} parent=1 // loop_footer_branch
      %14 = sbr.rel target = $region3
    $region8: #{tpu_custom_call.1} parent=1 // loop_exit
      _
    %2441 = vsyncpa [#allocation4], 1
    %s2442 = scalar_lea.sflag [#allocation4], 1
    %2443 = vsyncpa %s2442, 1
    %2444 = vsyncpa [#allocation7], 1
    %s2445 = scalar_lea.sflag [#allocation7], 1
    %2446 = vsyncpa %s2445, 1
    %2447 = vsyncpa [#allocation5], 1
    %s2448 = scalar_lea.sflag [#allocation5], 1
    %2449 = vsyncpa %s2448, 1

</llo_original>
